<compile_context>
chip_gen: v6e
topology: v6e:2x2x1
jax: 0.10.0
libtpu: 0.0.40
codegen_flags: <defaults>
</compile_context>

<pallas_src>
import functools

import jax
import jax.numpy as jnp
import numpy as np
from jax.experimental import pallas as pl
from jax.experimental.pallas import tpu as pltpu

LANE = 128


def _round_up(v, m):
    return (v + m - 1) // m * m


# ----------------------------------------------------------------------------
# Fused BasicBlock kernel.  One grid step == one image.
# ----------------------------------------------------------------------------
def _fused_block_kernel(xcols_ref, w1_ref, w2_ref, aux_ref, shifts_ref,
                        o_ref, y1pad_ref, lhs2_ref, *,
                        subsampling, option, Ho, Wo, Cin, Cp):
    M = Ho * Wo

    # ---- conv1 + folded BN1 + ReLU: ONE MXU matmul, K = 9*Cin --------------
    lhs1 = xcols_ref[0]                                     # [M, 9*Cin] bf16
    y1 = jnp.maximum(
        jnp.dot(lhs1, w1_ref[...], preferred_element_type=jnp.float32)
        + shifts_ref[0:1, :], 0.0)

    # ---- VMEM-resident intermediate (bf16) with a zero 1-px halo -----------
    # Zero only the 4 border strips; the interior is fully overwritten below.
    zrow = jnp.zeros((1, Wo + 2, Cp), jnp.bfloat16)
    zcol = jnp.zeros((Ho, 1, Cp), jnp.bfloat16)
    y1pad_ref[0:1, :, :] = zrow
    y1pad_ref[Ho + 1:Ho + 2, :, :] = zrow
    y1pad_ref[1:Ho + 1, 0:1, :] = zcol
    y1pad_ref[1:Ho + 1, Wo + 1:Wo + 2, :] = zcol
    y1pad_ref[1:Ho + 1, 1:Wo + 1, :] = y1.astype(jnp.bfloat16).reshape(Ho, Wo, Cp)

    # ---- conv2 im2col LHS in VMEM (bf16, lane-aligned column blocks) -------
    for t in range(9):
        kh, kw = t // 3, t % 3
        lhs2_ref[:, t * Cp:(t + 1) * Cp] = (
            y1pad_ref[kh:kh + Ho, kw:kw + Wo, :].reshape(M, Cp))

    # ---- shortcut + BN2 shift seed the output accumulator ------------------
    if subsampling and option == "A2":
        # 2x2 max-pool = elementwise max of the centre 4 conv1 taps.
        pooled = jnp.maximum(
            jnp.maximum(lhs1[:, 4 * Cin:5 * Cin], lhs1[:, 5 * Cin:6 * Cin]),
            jnp.maximum(lhs1[:, 7 * Cin:8 * Cin], lhs1[:, 8 * Cin:9 * Cin]))
        res = jnp.dot(pooled, aux_ref[...], preferred_element_type=jnp.float32)
    else:
        # identity / 'A1' (0/1 selector at the centre tap) or 'B' (conv, no BN,
        # exactly as in the PyTorch spec), all over the resident im2col columns.
        res = jnp.dot(lhs1, aux_ref[...], preferred_element_type=jnp.float32)
    o_ref[0] = res + shifts_ref[1:2, :]

    # ---- conv2 + folded BN2: ONE MXU matmul (K = 9*Cp) + residual + ReLU ----
    o_ref[0] = jnp.maximum(
        o_ref[0] + jnp.dot(lhs2_ref[...], w2_ref[...],
                           preferred_element_type=jnp.float32),
        0.0).astype(o_ref.dtype)


# ----------------------------------------------------------------------------
# Host-side packing (layout only, no hot-path compute).
# ----------------------------------------------------------------------------
def _im2col_taps(x_nhwc_bf16, stride):
    """Halo-pad + gather the 3x3 taps -> [N, Ho*Wo, 9*C] bf16 (column t*C+c)."""
    N, H, W, C = x_nhwc_bf16.shape
    Ho, Wo = H // stride, W // stride
    xp = jnp.pad(x_nhwc_bf16, ((0, 0), (1, 1), (1, 1), (0, 0)))
    cols = []
    for kh in range(3):
        for kw in range(3):
            tap = xp[:, kh:kh + stride * (Ho - 1) + 1:stride,
                     kw:kw + stride * (Wo - 1) + 1:stride, :]
            cols.append(tap.reshape(N, Ho * Wo, C))
    return jnp.concatenate(cols, axis=-1)


def _weights_stacked(w_oihw, scale, ci_pad, co_pad):
    """[Co, Ci, 3, 3] -> [9*ci_pad, co_pad] bf16, taps stacked along K
    (row = (kh*3+kw)*ci_pad + ci), with BN scale folded into output channels."""
    Co, Ci = w_oihw.shape[0], w_oihw.shape[1]
    w = jnp.transpose(w_oihw, (2, 3, 1, 0)).reshape(9, Ci, Co).astype(jnp.float32)
    if scale is not None:
        w = w * scale.reshape(1, 1, Co).astype(jnp.float32)
    w = jnp.pad(w, ((0, 0), (0, ci_pad - Ci), (0, co_pad - Co)))
    return w.reshape(9 * ci_pad, co_pad).astype(jnp.bfloat16)


@functools.partial(jax.jit, static_argnums=(2, 3, 4))
def basic_block_forward(x_nchw, params, n_layers, subsampling, option="A1"):
    """Forward pass of the PyTorch BasicBlock (eval-mode BN).  NCHW in / out."""
    N, Cin, H, W = x_nchw.shape
    Co = n_layers
    Cp = _round_up(max(Co, LANE), LANE)          # lane-dense padded channels
    stride = 2 if subsampling else 1
    if subsampling:
        assert Cin == Co // 2 and H % 2 == 0 and W % 2 == 0
    else:
        assert Cin == Co
    Ho, Wo = H // stride, W // stride
    M = Ho * Wo
    assert M % 8 == 0 and Wo % 8 == 0
    K1 = 9 * Cin

    # --- activations: bf16 host-side im2col (one HBM crossing, MXU-ready) ---
    x_nhwc = jnp.transpose(x_nchw, (0, 2, 3, 1)).astype(jnp.bfloat16)
    xcols = _im2col_taps(x_nhwc, stride)                      # [N, M, 9*Cin]

    # --- weights: BN scale folded, bf16, K-stacked, lane-dense output pad ---
    w1m = _weights_stacked(params["w1"], params["scale1"], Cin, Cp)  # [9*Cin, Cp]
    w2m = _weights_stacked(params["w2"], params["scale2"], Cp, Cp)   # [9*Cp , Cp]

    if subsampling and option == "B":
        aux = _weights_stacked(params["w_sc"], None, Cin, Cp)        # conv shortcut
    elif subsampling and option == "A2":
        aux = jnp.pad(jnp.eye(Cin, dtype=jnp.float32),
                      ((0, 0), (0, Cp - Cin))).astype(jnp.bfloat16)  # [Cin, Cp]
    elif (not subsampling) or option == "A1":
        # Identity / strided-slice shortcut with channel zero-padding expressed
        # as a 0/1 selector on the centre tap of the conv1 im2col columns.
        sel = jnp.zeros((9, Cin, Cp), jnp.float32)
        sel = sel.at[4, :, :Cin].set(jnp.eye(Cin, dtype=jnp.float32))
        aux = sel.reshape(K1, Cp).astype(jnp.bfloat16)               # [9*Cin, Cp]
    else:
        raise ValueError("option must be 'A1', 'A2' or 'B'")

    shifts = jnp.stack([
        jnp.pad(params["shift1"].astype(jnp.float32), (0, Cp - Co)),
        jnp.pad(params["shift2"].astype(jnp.float32), (0, Cp - Co)),
    ])                                                               # [2, Cp]

    kernel = functools.partial(
        _fused_block_kernel, subsampling=subsampling, option=option,
        Ho=Ho, Wo=Wo, Cin=Cin, Cp=Cp)

    out = pl.pallas_call(
        kernel,
        out_shape=jax.ShapeDtypeStruct((N, M, Cp), jnp.float32),
        grid_spec=pltpu.PrefetchScalarGridSpec(
            num_scalar_prefetch=0,
            grid=(N,),
            in_specs=[
                pl.BlockSpec((1, M, K1), lambda n: (n, 0, 0)),
                pl.BlockSpec(w1m.shape, lambda n: (0, 0)),
                pl.BlockSpec(w2m.shape, lambda n: (0, 0)),
                pl.BlockSpec(aux.shape, lambda n: (0, 0)),
                pl.BlockSpec((2, Cp), lambda n: (0, 0)),
            ],
            out_specs=pl.BlockSpec((1, M, Cp), lambda n: (n, 0, 0)),
            scratch_shapes=[
                pltpu.VMEM((Ho + 2, Wo + 2, Cp), jnp.bfloat16),   # y1 + halo
                pltpu.VMEM((M, 9 * Cp), jnp.bfloat16),            # conv2 im2col
            ],
        ),
        compiler_params=pltpu.CompilerParams(
            dimension_semantics=("parallel",)),
    )(xcols, w1m, w2m, aux, shifts)

    out = out[:, :, :Co].reshape(N, Ho, Wo, Co)
    return jnp.transpose(out, (0, 3, 1, 2))          # NCHW only at the boundary


# ----------------------------------------------------------------------------
# Pure-JAX reference.  Mirrors the kernel's bf16 quantization points (folded
# weights and activations right before each matmul); accumulation is full f32.
# ----------------------------------------------------------------------------
def ref_forward(x_nchw, params, n_layers, subsampling, option="A1"):
    f32 = jnp.float32
    bf = lambda a: a.astype(jnp.bfloat16).astype(f32)

    def conv(x, w, stride):
        return jax.lax.conv_general_dilated(
            x, w, (stride, stride), ((1, 1), (1, 1)),
            dimension_numbers=("NCHW", "OIHW", "NCHW"),
            precision=jax.lax.Precision.HIGHEST)

    Co = n_layers
    b1 = params["shift1"].reshape(1, Co, 1, 1).astype(f32)
    b2 = params["shift2"].reshape(1, Co, 1, 1).astype(f32)
    w1f = bf(params["w1"] * params["scale1"].reshape(Co, 1, 1, 1))
    w2f = bf(params["w2"] * params["scale2"].reshape(Co, 1, 1, 1))
    xq = bf(x_nchw.astype(f32))

    y1 = jnp.maximum(conv(xq, w1f, 2 if subsampling else 1) + b1, 0.0)
    y2 = conv(bf(y1), w2f, 1) + b2

    if subsampling:
        pad_c = Co - Co // 2
        if option == "A1":
            res = jnp.pad(xq[:, :, ::2, ::2], ((0, 0), (0, pad_c), (0, 0), (0, 0)))
        elif option == "A2":
            N, C, H, W = x_nchw.shape
            res = jnp.pad(xq.reshape(N, C, H // 2, 2, W // 2, 2).max(axis=(3, 5)),
                          ((0, 0), (0, pad_c), (0, 0), (0, 0)))
        else:
            res = conv(xq, bf(params["w_sc"]), 2)
    else:
        res = xq
    return jnp.maximum(y2 + res, 0.0)


def make_params(key, n_layers, subsampling):
    c_in = n_layers // 2 if subsampling else n_layers
    ks = jax.random.split(key, 11)
    eps = 1e-5

    def bn_fold(kg, kb, km, kv, c):
        gamma = 1.0 + 0.1 * jax.random.normal(kg, (c,), jnp.float32)
        beta = 0.1 * jax.random.normal(kb, (c,), jnp.float32)
        mean = 0.1 * jax.random.normal(km, (c,), jnp.float32)
        var = jax.random.uniform(kv, (c,), jnp.float32, 0.5, 1.5)
        scale = gamma / jnp.sqrt(var + eps)
        shift = beta - mean * scale
        return scale, shift

    w1 = 0.1 * jax.random.normal(ks[0], (n_layers, c_in, 3, 3), jnp.float32)
    w2 = 0.1 * jax.random.normal(ks[1], (n_layers, n_layers, 3, 3), jnp.float32)
    w_sc = 0.1 * jax.random.normal(ks[2], (n_layers, n_layers // 2, 3, 3), jnp.float32)
    scale1, shift1 = bn_fold(ks[3], ks[4], ks[5], ks[6], n_layers)
    scale2, shift2 = bn_fold(ks[7], ks[8], ks[9], ks[10], n_layers)
    return dict(w1=w1, w2=w2, w_sc=w_sc,
                scale1=scale1, shift1=shift1, scale2=scale2, shift2=shift2)


if __name__ == "__main__":
    key = jax.random.PRNGKey(0)
    k_x1, k_p1, k_x2, k_p2 = jax.random.split(key, 4)

    n_layers = 8

    # 1) Subsampling block, option 'A1' (stride-2 conv1 + strided-slice shortcut).
    x1 = jax.random.normal(k_x1, (2, n_layers // 2, 16, 16), jnp.float32)
    p1 = make_params(k_p1, n_layers, subsampling=True)
    out1 = jax.block_until_ready(basic_block_forward(x1, p1, n_layers, True, "A1"))
    ref1 = jax.block_until_ready(ref_forward(x1, p1, n_layers, True, "A1"))
    assert out1.shape == (2, n_layers, 8, 8), out1.shape
    np.testing.assert_allclose(np.asarray(out1), np.asarray(ref1),
                               rtol=1e-2, atol=1e-2)

    # 2) Identity (non-subsampling) block.
    x2 = jax.random.normal(k_x2, (2, n_layers, 16, 16), jnp.float32)
    p2 = make_params(k_p2, n_layers, subsampling=False)
    out2 = jax.block_until_ready(basic_block_forward(x2, p2, n_layers, False, "A1"))
    ref2 = jax.block_until_ready(ref_forward(x2, p2, n_layers, False, "A1"))
    assert out2.shape == (2, n_layers, 16, 16), out2.shape
    np.testing.assert_allclose(np.asarray(out2), np.asarray(ref2),
                               rtol=1e-2, atol=1e-2)

    print("KERNEL_OK")
</pallas_src>

<mosaic_0001>
module attributes {stable_mosaic.version = 11 : i64} {
  func.func @_fused_block_kernel(%arg0: i32, %arg1: memref<1x64x36xbf16, #tpu.memory_space<vmem>>, %arg2: memref<36x128xbf16, #tpu.memory_space<vmem>>, %arg3: memref<1152x128xbf16, #tpu.memory_space<vmem>>, %arg4: memref<36x128xbf16, #tpu.memory_space<vmem>>, %arg5: memref<2x128xf32, #tpu.memory_space<vmem>>, %arg6: memref<1x64x128xf32, #tpu.memory_space<vmem>>, %arg7: memref<10x10x128xbf16, #tpu.memory_space<vmem>>, %arg8: memref<64x1152xbf16, #tpu.memory_space<vmem>>) attributes {dimension_semantics = [#tpu.dimension_semantics<parallel>], iteration_bounds = array<i64: 2>, scalar_prefetch = 0 : i64, scratch_operands = 2 : i64, tpu.core_type = #tpu.core_type<tc>, window_params = [{transform_indices = @transform_0, window_bounds = array<i64: 1, 64, 36>}, {pipeline_mode = #tpu.pipeline_mode<synchronous>, transform_indices = @transform_1, window_bounds = array<i64: 36, 128>}, {pipeline_mode = #tpu.pipeline_mode<synchronous>, transform_indices = @transform_2, window_bounds = array<i64: 1152, 128>}, {pipeline_mode = #tpu.pipeline_mode<synchronous>, transform_indices = @transform_3, window_bounds = array<i64: 36, 128>}, {pipeline_mode = #tpu.pipeline_mode<synchronous>, transform_indices = @transform_4, window_bounds = array<i64: 2, 128>}, {transform_indices = @transform_5, window_bounds = array<i64: 1, 64, 128>}]} {
    %c0 = arith.constant 0 : index
    %c0_0 = arith.constant 0 : index
    %c0_1 = arith.constant 0 : index
    %0 = vector.load %arg1[%c0, %c0_0, %c0_1] : memref<1x64x36xbf16, #tpu.memory_space<vmem>>, vector<1x64x36xbf16>
    %1 = vector.shape_cast %0 : vector<1x64x36xbf16> to vector<64x36xbf16>
    %c0_2 = arith.constant 0 : index
    %c0_3 = arith.constant 0 : index
    %2 = vector.load %arg2[%c0_2, %c0_3] : memref<36x128xbf16, #tpu.memory_space<vmem>>, vector<36x128xbf16>
    %cst = arith.constant dense<0.000000e+00> : vector<64x128xf32>
    %3 = tpu.matmul %1, %2, %cst {dimension_numbers = #tpu.dot_dimension_numbers<[1], [0], [0], [1], [0, 0, 1, 1], [], []>} : vector<64x36xbf16>, vector<36x128xbf16>, vector<64x128xf32> -> vector<64x128xf32>
    %c0_4 = arith.constant 0 : index
    %c0_5 = arith.constant 0 : index
    %4 = vector.load %arg5[%c0_4, %c0_5] : memref<2x128xf32, #tpu.memory_space<vmem>>, vector<1x128xf32>
    %5 = vector.broadcast %4 : vector<1x128xf32> to vector<64x128xf32>
    %6 = arith.addf %3, %5 : vector<64x128xf32>
    %cst_6 = arith.constant 0.000000e+00 : f32
    %7 = vector.broadcast %cst_6 : f32 to vector<64x128xf32>
    %8 = arith.maximumf %6, %7 : vector<64x128xf32>
    %cst_7 = arith.constant 0.000000e+00 : bf16
    %9 = vector.broadcast %cst_7 : bf16 to vector<1x10x128xbf16>
    %cst_8 = arith.constant 0.000000e+00 : bf16
    %10 = vector.broadcast %cst_8 : bf16 to vector<8x1x128xbf16>
    %c0_9 = arith.constant 0 : index
    %c0_10 = arith.constant 0 : index
    %c0_11 = arith.constant 0 : index
    %11 = vector.load %arg7[%c0_9, %c0_10, %c0_11] : memref<10x10x128xbf16, #tpu.memory_space<vmem>>, vector<1x10x128xbf16>
    tpu.vector_store %arg7[%c0_9, %c0_10, %c0_11], %9 {strides = array<i32>} : memref<10x10x128xbf16, #tpu.memory_space<vmem>>, vector<1x10x128xbf16>,
    %c9 = arith.constant 9 : index
    %c0_12 = arith.constant 0 : index
    %c0_13 = arith.constant 0 : index
    %12 = vector.load %arg7[%c9, %c0_12, %c0_13] : memref<10x10x128xbf16, #tpu.memory_space<vmem>>, vector<1x10x128xbf16>
    tpu.vector_store %arg7[%c9, %c0_12, %c0_13], %9 {strides = array<i32>} : memref<10x10x128xbf16, #tpu.memory_space<vmem>>, vector<1x10x128xbf16>,
    %c1 = arith.constant 1 : index
    %c0_14 = arith.constant 0 : index
    %c0_15 = arith.constant 0 : index
    %13 = vector.load %arg7[%c1, %c0_14, %c0_15] : memref<10x10x128xbf16, #tpu.memory_space<vmem>>, vector<8x1x128xbf16>
    tpu.vector_store %arg7[%c1, %c0_14, %c0_15], %10 {strides = array<i32>} : memref<10x10x128xbf16, #tpu.memory_space<vmem>>, vector<8x1x128xbf16>,
    %c1_16 = arith.constant 1 : index
    %c9_17 = arith.constant 9 : index
    %c0_18 = arith.constant 0 : index
    %14 = vector.load %arg7[%c1_16, %c9_17, %c0_18] : memref<10x10x128xbf16, #tpu.memory_space<vmem>>, vector<8x1x128xbf16>
    tpu.vector_store %arg7[%c1_16, %c9_17, %c0_18], %10 {strides = array<i32>} : memref<10x10x128xbf16, #tpu.memory_space<vmem>>, vector<8x1x128xbf16>,
    %15 = arith.truncf %8 : vector<64x128xf32> to vector<64x128xbf16>
    %16 = vector.shape_cast %15 : vector<64x128xbf16> to vector<8x8x128xbf16>
    %c1_19 = arith.constant 1 : index
    %c1_20 = arith.constant 1 : index
    %c0_21 = arith.constant 0 : index
    %17 = vector.load %arg7[%c1_19, %c1_20, %c0_21] : memref<10x10x128xbf16, #tpu.memory_space<vmem>>, vector<8x8x128xbf16>
    tpu.vector_store %arg7[%c1_19, %c1_20, %c0_21], %16 {strides = array<i32>} : memref<10x10x128xbf16, #tpu.memory_space<vmem>>, vector<8x8x128xbf16>,
    %c0_22 = arith.constant 0 : index
    %c0_23 = arith.constant 0 : index
    %c0_24 = arith.constant 0 : index
    %18 = vector.load %arg7[%c0_22, %c0_23, %c0_24] : memref<10x10x128xbf16, #tpu.memory_space<vmem>>, vector<8x8x128xbf16>
    %19 = vector.shape_cast %18 : vector<8x8x128xbf16> to vector<64x128xbf16>
    %c0_25 = arith.constant 0 : index
    %c0_26 = arith.constant 0 : index
    %20 = vector.load %arg8[%c0_25, %c0_26] : memref<64x1152xbf16, #tpu.memory_space<vmem>>, vector<64x128xbf16>
    tpu.vector_store %arg8[%c0_25, %c0_26], %19 {strides = array<i32>} : memref<64x1152xbf16, #tpu.memory_space<vmem>>, vector<64x128xbf16>,
    %c0_27 = arith.constant 0 : index
    %c1_28 = arith.constant 1 : index
    %c0_29 = arith.constant 0 : index
    %21 = vector.load %arg7[%c0_27, %c1_28, %c0_29] : memref<10x10x128xbf16, #tpu.memory_space<vmem>>, vector<8x8x128xbf16>
    %22 = vector.shape_cast %21 : vector<8x8x128xbf16> to vector<64x128xbf16>
    %c0_30 = arith.constant 0 : index
    %c128 = arith.constant 128 : index
    %23 = vector.load %arg8[%c0_30, %c128] : memref<64x1152xbf16, #tpu.memory_space<vmem>>, vector<64x128xbf16>
    tpu.vector_store %arg8[%c0_30, %c128], %22 {strides = array<i32>} : memref<64x1152xbf16, #tpu.memory_space<vmem>>, vector<64x128xbf16>,
    %c0_31 = arith.constant 0 : index
    %c2 = arith.constant 2 : index
    %c0_32 = arith.constant 0 : index
    %24 = vector.load %arg7[%c0_31, %c2, %c0_32] : memref<10x10x128xbf16, #tpu.memory_space<vmem>>, vector<8x8x128xbf16>
    %25 = vector.shape_cast %24 : vector<8x8x128xbf16> to vector<64x128xbf16>
    %c0_33 = arith.constant 0 : index
    %c256 = arith.constant 256 : index
    %26 = vector.load %arg8[%c0_33, %c256] : memref<64x1152xbf16, #tpu.memory_space<vmem>>, vector<64x128xbf16>
    tpu.vector_store %arg8[%c0_33, %c256], %25 {strides = array<i32>} : memref<64x1152xbf16, #tpu.memory_space<vmem>>, vector<64x128xbf16>,
    %c1_34 = arith.constant 1 : index
    %c0_35 = arith.constant 0 : index
    %c0_36 = arith.constant 0 : index
    %27 = vector.load %arg7[%c1_34, %c0_35, %c0_36] : memref<10x10x128xbf16, #tpu.memory_space<vmem>>, vector<8x8x128xbf16>
    %28 = vector.shape_cast %27 : vector<8x8x128xbf16> to vector<64x128xbf16>
    %c0_37 = arith.constant 0 : index
    %c384 = arith.constant 384 : index
    %29 = vector.load %arg8[%c0_37, %c384] : memref<64x1152xbf16, #tpu.memory_space<vmem>>, vector<64x128xbf16>
    tpu.vector_store %arg8[%c0_37, %c384], %28 {strides = array<i32>} : memref<64x1152xbf16, #tpu.memory_space<vmem>>, vector<64x128xbf16>,
    %c1_38 = arith.constant 1 : index
    %c1_39 = arith.constant 1 : index
    %c0_40 = arith.constant 0 : index
    %30 = vector.load %arg7[%c1_38, %c1_39, %c0_40] : memref<10x10x128xbf16, #tpu.memory_space<vmem>>, vector<8x8x128xbf16>
    %31 = vector.shape_cast %30 : vector<8x8x128xbf16> to vector<64x128xbf16>
    %c0_41 = arith.constant 0 : index
    %c512 = arith.constant 512 : index
    %32 = vector.load %arg8[%c0_41, %c512] : memref<64x1152xbf16, #tpu.memory_space<vmem>>, vector<64x128xbf16>
    tpu.vector_store %arg8[%c0_41, %c512], %31 {strides = array<i32>} : memref<64x1152xbf16, #tpu.memory_space<vmem>>, vector<64x128xbf16>,
    %c1_42 = arith.constant 1 : index
    %c2_43 = arith.constant 2 : index
    %c0_44 = arith.constant 0 : index
    %33 = vector.load %arg7[%c1_42, %c2_43, %c0_44] : memref<10x10x128xbf16, #tpu.memory_space<vmem>>, vector<8x8x128xbf16>
    %34 = vector.shape_cast %33 : vector<8x8x128xbf16> to vector<64x128xbf16>
    %c0_45 = arith.constant 0 : index
    %c640 = arith.constant 640 : index
    %35 = vector.load %arg8[%c0_45, %c640] : memref<64x1152xbf16, #tpu.memory_space<vmem>>, vector<64x128xbf16>
    tpu.vector_store %arg8[%c0_45, %c640], %34 {strides = array<i32>} : memref<64x1152xbf16, #tpu.memory_space<vmem>>, vector<64x128xbf16>,
    %c2_46 = arith.constant 2 : index
    %c0_47 = arith.constant 0 : index
    %c0_48 = arith.constant 0 : index
    %36 = vector.load %arg7[%c2_46, %c0_47, %c0_48] : memref<10x10x128xbf16, #tpu.memory_space<vmem>>, vector<8x8x128xbf16>
    %37 = vector.shape_cast %36 : vector<8x8x128xbf16> to vector<64x128xbf16>
    %c0_49 = arith.constant 0 : index
    %c768 = arith.constant 768 : index
    %38 = vector.load %arg8[%c0_49, %c768] : memref<64x1152xbf16, #tpu.memory_space<vmem>>, vector<64x128xbf16>
    tpu.vector_store %arg8[%c0_49, %c768], %37 {strides = array<i32>} : memref<64x1152xbf16, #tpu.memory_space<vmem>>, vector<64x128xbf16>,
    %c2_50 = arith.constant 2 : index
    %c1_51 = arith.constant 1 : index
    %c0_52 = arith.constant 0 : index
    %39 = vector.load %arg7[%c2_50, %c1_51, %c0_52] : memref<10x10x128xbf16, #tpu.memory_space<vmem>>, vector<8x8x128xbf16>
    %40 = vector.shape_cast %39 : vector<8x8x128xbf16> to vector<64x128xbf16>
    %c0_53 = arith.constant 0 : index
    %c896 = arith.constant 896 : index
    %41 = vector.load %arg8[%c0_53, %c896] : memref<64x1152xbf16, #tpu.memory_space<vmem>>, vector<64x128xbf16>
    tpu.vector_store %arg8[%c0_53, %c896], %40 {strides = array<i32>} : memref<64x1152xbf16, #tpu.memory_space<vmem>>, vector<64x128xbf16>,
    %c2_54 = arith.constant 2 : index
    %c2_55 = arith.constant 2 : index
    %c0_56 = arith.constant 0 : index
    %42 = vector.load %arg7[%c2_54, %c2_55, %c0_56] : memref<10x10x128xbf16, #tpu.memory_space<vmem>>, vector<8x8x128xbf16>
    %43 = vector.shape_cast %42 : vector<8x8x128xbf16> to vector<64x128xbf16>
    %c0_57 = arith.constant 0 : index
    %c1024 = arith.constant 1024 : index
    %44 = vector.load %arg8[%c0_57, %c1024] : memref<64x1152xbf16, #tpu.memory_space<vmem>>, vector<64x128xbf16>
    tpu.vector_store %arg8[%c0_57, %c1024], %43 {strides = array<i32>} : memref<64x1152xbf16, #tpu.memory_space<vmem>>, vector<64x128xbf16>,
    %c0_58 = arith.constant 0 : index
    %c0_59 = arith.constant 0 : index
    %45 = vector.load %arg4[%c0_58, %c0_59] : memref<36x128xbf16, #tpu.memory_space<vmem>>, vector<36x128xbf16>
    %cst_60 = arith.constant dense<0.000000e+00> : vector<64x128xf32>
    %46 = tpu.matmul %1, %45, %cst_60 {dimension_numbers = #tpu.dot_dimension_numbers<[1], [0], [0], [1], [0, 0, 1, 1], [], []>} : vector<64x36xbf16>, vector<36x128xbf16>, vector<64x128xf32> -> vector<64x128xf32>
    %c1_61 = arith.constant 1 : index
    %c0_62 = arith.constant 0 : index
    %47 = vector.load %arg5[%c1_61, %c0_62] : memref<2x128xf32, #tpu.memory_space<vmem>>, vector<1x128xf32>
    %48 = vector.broadcast %47 : vector<1x128xf32> to vector<64x128xf32>
    %49 = arith.addf %46, %48 : vector<64x128xf32>
    %c0_63 = arith.constant 0 : index
    %c0_64 = arith.constant 0 : index
    %c0_65 = arith.constant 0 : index
    %50 = vector.load %arg6[%c0_63, %c0_64, %c0_65] : memref<1x64x128xf32, #tpu.memory_space<vmem>>, vector<1x64x128xf32>
    %51 = vector.shape_cast %50 : vector<1x64x128xf32> to vector<64x128xf32>
    %52 = vector.shape_cast %49 : vector<64x128xf32> to vector<1x64x128xf32>
    tpu.vector_store %arg6[%c0_63, %c0_64, %c0_65], %52 {strides = array<i32>} : memref<1x64x128xf32, #tpu.memory_space<vmem>>, vector<1x64x128xf32>,
    %c0_66 = arith.constant 0 : index
    %c0_67 = arith.constant 0 : index
    %c0_68 = arith.constant 0 : index
    %53 = vector.load %arg6[%c0_66, %c0_67, %c0_68] : memref<1x64x128xf32, #tpu.memory_space<vmem>>, vector<1x64x128xf32>
    %54 = vector.shape_cast %53 : vector<1x64x128xf32> to vector<64x128xf32>
    %c0_69 = arith.constant 0 : index
    %c0_70 = arith.constant 0 : index
    %55 = vector.load %arg8[%c0_69, %c0_70] : memref<64x1152xbf16, #tpu.memory_space<vmem>>, vector<64x1152xbf16>
    %c0_71 = arith.constant 0 : index
    %c0_72 = arith.constant 0 : index
    %56 = vector.load %arg3[%c0_71, %c0_72] : memref<1152x128xbf16, #tpu.memory_space<vmem>>, vector<1152x128xbf16>
    %cst_73 = arith.constant dense<0.000000e+00> : vector<64x128xf32>
    %57 = tpu.matmul %55, %56, %cst_73 {dimension_numbers = #tpu.dot_dimension_numbers<[1], [0], [0], [1], [0, 0, 1, 1], [], []>} : vector<64x1152xbf16>, vector<1152x128xbf16>, vector<64x128xf32> -> vector<64x128xf32>
    %58 = arith.addf %54, %57 : vector<64x128xf32>
    %cst_74 = arith.constant 0.000000e+00 : f32
    %59 = vector.broadcast %cst_74 : f32 to vector<64x128xf32>
    %60 = arith.maximumf %58, %59 : vector<64x128xf32>
    %c0_75 = arith.constant 0 : index
    %c0_76 = arith.constant 0 : index
    %c0_77 = arith.constant 0 : index
    %61 = vector.load %arg6[%c0_75, %c0_76, %c0_77] : memref<1x64x128xf32, #tpu.memory_space<vmem>>, vector<1x64x128xf32>
    %62 = vector.shape_cast %61 : vector<1x64x128xf32> to vector<64x128xf32>
    %63 = vector.shape_cast %60 : vector<64x128xf32> to vector<1x64x128xf32>
    tpu.vector_store %arg6[%c0_75, %c0_76, %c0_77], %63 {strides = array<i32>} : memref<1x64x128xf32, #tpu.memory_space<vmem>>, vector<1x64x128xf32>,
    return
  }
  func.func @transform_0(%arg0: i32) -> (i32, i32, i32) {
    %c0_i32 = arith.constant 0 : i32
    %c0_i32_0 = arith.constant 0 : i32
    %c0_i32_1 = arith.constant 0 : i32
    return %arg0, %c0_i32, %c0_i32_0 : i32, i32, i32
  }
  func.func @transform_1(%arg0: i32) -> (i32, i32) {
    %c0_i32 = arith.constant 0 : i32
    %c0_i32_0 = arith.constant 0 : i32
    %c0_i32_1 = arith.constant 0 : i32
    return %c0_i32, %c0_i32_0 : i32, i32
  }
  func.func @transform_2(%arg0: i32) -> (i32, i32) {
    %c0_i32 = arith.constant 0 : i32
    %c0_i32_0 = arith.constant 0 : i32
    %c0_i32_1 = arith.constant 0 : i32
    return %c0_i32, %c0_i32_0 : i32, i32
  }
  func.func @transform_3(%arg0: i32) -> (i32, i32) {
    %c0_i32 = arith.constant 0 : i32
    %c0_i32_0 = arith.constant 0 : i32
    %c0_i32_1 = arith.constant 0 : i32
    return %c0_i32, %c0_i32_0 : i32, i32
  }
  func.func @transform_4(%arg0: i32) -> (i32, i32) {
    %c0_i32 = arith.constant 0 : i32
    %c0_i32_0 = arith.constant 0 : i32
    %c0_i32_1 = arith.constant 0 : i32
    return %c0_i32, %c0_i32_0 : i32, i32
  }
  func.func @transform_5(%arg0: i32) -> (i32, i32, i32) {
    %c0_i32 = arith.constant 0 : i32
    %c0_i32_0 = arith.constant 0 : i32
    %c0_i32_1 = arith.constant 0 : i32
    return %arg0, %c0_i32, %c0_i32_0 : i32, i32, i32
  }
}

</mosaic_0001>

<llo_original>
// kernel: basic_block_forward.1
$region0: #{basic_block_forward.1}
  #allocation0 [shape = 'u32[]', space=smem, size = 0x4, offset = 0x4, fixed_abs, tag = 'smem constant byte address 0x4 - core index']
  #allocation1 [shape = 'u32[144,128]{1,0:T(1,128)}', space=vmem, size = 0x12000, scoped, tag = 'internal scratch']
  #allocation2 [shape = 'bf16[10,10,128]{2,1,0:T(8,128)(2,1)}', space=vmem, size = 0xa000, scoped, tag = 'scratch operand']
  #allocation3 [shape = 'bf16[64,1152]{1,0:T(8,128)(2,1)}', space=vmem, size = 0x24000, scoped, tag = 'scratch operand']
  %s0 = inlined_call_operand.vmem [shape: bf16[2,64,36], index: 0, kind: input, shape index: {}]
  %s1 = inlined_call_operand.vmem [shape: bf16[36,128], index: 1, kind: input, shape index: {}]
  %s2 = inlined_call_operand.vmem [shape: bf16[1152,128], index: 2, kind: input, shape index: {}]
  %s3 = inlined_call_operand.vmem [shape: bf16[36,128], index: 3, kind: input, shape index: {}]
  %s4 = inlined_call_operand.vmem [shape: f32[2,128], index: 4, kind: input, shape index: {}]
  %s5 = inlined_call_operand.vmem [shape: f32[2,64,128], index: 5, kind: output, shape index: {}]
  %s6 = sld [smem:[#allocation0]]
  $region53: #{basic_block_forward.1} parent=0
    _
  %s8 = ssub.s32 1, %s6
  %s9 = scalar_select 0, %s8, %s6
  loop: start=0, step=1, limit=4
  $region2: #{basic_block_forward.1} parent=0 // loop_pre_header
    _
  $region3: #{basic_block_forward.1} parent=0 // loop_header
    %s11 = sphi 0, %s15
    %p12 = scmp.ge.s32.totalorder %s11, 4
    %s21 = sphi 0, %s23
    %s24 = sphi 0, %s21
    %s25 = sphi 0, %s24
    %s41 = sphi 0, %s25
    %s45 = sphi 0, %s45
    %s47 = sphi 0, %s45
    %s48 = sphi 0, %s47
    %s62 = sphi 0, %s48
    %s66 = sphi 0, %s66
    %s68 = sphi 0, %s66
    %s69 = sphi 0, %s68
    %s83 = sphi 0, %s69
    %s87 = sphi 0, %s87
    %s89 = sphi 0, %s87
    %s90 = sphi 0, %s89
    %s104 = sphi 0, %s90
    %s108 = sphi 0, %s108
    %s110 = sphi 0, %s108
    %s111 = sphi 0, %s110
    %s125 = sphi 0, %s111
    %s131 = sphi 0, %s133
    %s134 = sphi 0, %s131
    %s135 = sphi 0, %s134
    %s151 = sphi 0, %s135
  $region4: #{basic_block_forward.1} parent=0 // loop_header_branch
    %14 = sbr.rel (%p12) target = $region8
  $region5: #{basic_block_forward.1} parent=0 // loop_body
    %s16 = ssub.s32 %s11, 1
    %s17 = ssub.s32 %s11, 2
    %s18 = sadd.s32 %s11, 1
    %s19 = ssub.s32 %s11, %s18
    %p20 = scmp.eq.s32.totalorder %s19, 0
    %s22 = sadd.s32 %s21, 1
    %s23 = scalar_select %p20, %s21, %s22
    %p26 = pneg %p20
    %p27 = scmp.eq.s32.totalorder %s11, 1
    %p28 = por %p26, %p27
    %p29 = scmp.ne.s32.totalorder %s21, %s24
    %p30 = scmp.eq.s32.totalorder %s11, 0
    %p31 = por %p29, %p30
    %p32 = scmp.ne.s32.totalorder %s21, %s24
    %p33 = scmp.eq.s32.totalorder %s16, 1
    %p34 = por %p32, %p33
    %p35 = scmp.ne.s32.totalorder %s24, %s25
    %p36 = scmp.eq.s32.totalorder %s16, 0
    %p37 = por %p35, %p36
    %p38 = scmp.ne.s32.totalorder %s24, %s25
    %p39 = scmp.eq.s32.totalorder %s17, 1
    %p40 = por %p38, %p39
    %p42 = scmp.ne.s32.totalorder %s25, %s41
    %p43 = scmp.eq.s32.totalorder %s17, 0
    %p44 = por %p42, %p43
    %s46 = sadd.s32 %s45, 1
    %p49 = scmp.eq.s32.totalorder %s11, 1
    %p50 = scmp.ne.s32.totalorder %s45, %s47
    %p51 = scmp.eq.s32.totalorder %s11, 0
    %p52 = por %p50, %p51
    %p53 = scmp.ne.s32.totalorder %s45, %s47
    %p54 = scmp.eq.s32.totalorder %s16, 1
    %p55 = por %p53, %p54
    %p56 = scmp.ne.s32.totalorder %s47, %s48
    %p57 = scmp.eq.s32.totalorder %s16, 0
    %p58 = por %p56, %p57
    %p59 = scmp.ne.s32.totalorder %s47, %s48
    %p60 = scmp.eq.s32.totalorder %s17, 1
    %p61 = por %p59, %p60
    %p63 = scmp.ne.s32.totalorder %s48, %s62
    %p64 = scmp.eq.s32.totalorder %s17, 0
    %p65 = por %p63, %p64
    %s67 = sadd.s32 %s66, 1
    %p70 = scmp.eq.s32.totalorder %s11, 1
    %p71 = scmp.ne.s32.totalorder %s66, %s68
    %p72 = scmp.eq.s32.totalorder %s11, 0
    %p73 = por %p71, %p72
    %p74 = scmp.ne.s32.totalorder %s66, %s68
    %p75 = scmp.eq.s32.totalorder %s16, 1
    %p76 = por %p74, %p75
    %p77 = scmp.ne.s32.totalorder %s68, %s69
    %p78 = scmp.eq.s32.totalorder %s16, 0
    %p79 = por %p77, %p78
    %p80 = scmp.ne.s32.totalorder %s68, %s69
    %p81 = scmp.eq.s32.totalorder %s17, 1
    %p82 = por %p80, %p81
    %p84 = scmp.ne.s32.totalorder %s69, %s83
    %p85 = scmp.eq.s32.totalorder %s17, 0
    %p86 = por %p84, %p85
    %s88 = sadd.s32 %s87, 1
    %p91 = scmp.eq.s32.totalorder %s11, 1
    %p92 = scmp.ne.s32.totalorder %s87, %s89
    %p93 = scmp.eq.s32.totalorder %s11, 0
    %p94 = por %p92, %p93
    %p95 = scmp.ne.s32.totalorder %s87, %s89
    %p96 = scmp.eq.s32.totalorder %s16, 1
    %p97 = por %p95, %p96
    %p98 = scmp.ne.s32.totalorder %s89, %s90
    %p99 = scmp.eq.s32.totalorder %s16, 0
    %p100 = por %p98, %p99
    %p101 = scmp.ne.s32.totalorder %s89, %s90
    %p102 = scmp.eq.s32.totalorder %s17, 1
    %p103 = por %p101, %p102
    %p105 = scmp.ne.s32.totalorder %s90, %s104
    %p106 = scmp.eq.s32.totalorder %s17, 0
    %p107 = por %p105, %p106
    %s109 = sadd.s32 %s108, 1
    %p112 = scmp.eq.s32.totalorder %s11, 1
    %p113 = scmp.ne.s32.totalorder %s108, %s110
    %p114 = scmp.eq.s32.totalorder %s11, 0
    %p115 = por %p113, %p114
    %p116 = scmp.ne.s32.totalorder %s108, %s110
    %p117 = scmp.eq.s32.totalorder %s16, 1
    %p118 = por %p116, %p117
    %p119 = scmp.ne.s32.totalorder %s110, %s111
    %p120 = scmp.eq.s32.totalorder %s16, 0
    %p121 = por %p119, %p120
    %p122 = scmp.ne.s32.totalorder %s110, %s111
    %p123 = scmp.eq.s32.totalorder %s17, 1
    %p124 = por %p122, %p123
    %p126 = scmp.ne.s32.totalorder %s111, %s125
    %p127 = scmp.eq.s32.totalorder %s17, 0
    %p128 = por %p126, %p127
    %s129 = ssub.s32 %s11, %s18
    %p130 = scmp.eq.s32.totalorder %s129, 0
    %s132 = sadd.s32 %s131, 1
    %s133 = scalar_select %p130, %s131, %s132
    %p136 = pneg %p130
    %p137 = scmp.eq.s32.totalorder %s11, 1
    %p138 = por %p136, %p137
    %p139 = scmp.ne.s32.totalorder %s131, %s134
    %p140 = scmp.eq.s32.totalorder %s11, 0
    %p141 = por %p139, %p140
    %p142 = scmp.ne.s32.totalorder %s131, %s134
    %p143 = scmp.eq.s32.totalorder %s16, 1
    %p144 = por %p142, %p143
    %p145 = scmp.ne.s32.totalorder %s134, %s135
    %p146 = scmp.eq.s32.totalorder %s16, 0
    %p147 = por %p145, %p146
    %p148 = scmp.ne.s32.totalorder %s134, %s135
    %p149 = scmp.eq.s32.totalorder %s17, 1
    %p150 = por %p148, %p149
    %p152 = scmp.ne.s32.totalorder %s135, %s151
    %p153 = scmp.eq.s32.totalorder %s17, 0
    %p154 = por %p152, %p153
    %p155 = scmp.le.s32.totalorder 1, %s11
    %p156 = scmp.lt.s32.totalorder %s11, 3
    %p157 = pnand %p155, %p156
    %p158 = pneg %p157
    // Predicated region
    $region9: #{basic_block_forward.1} parent=5 // pred_check
      _
    $region10: #{basic_block_forward.1} parent=5 // pred_check_branch
      %160 = sbr.rel (%p157) target = $region12
    $region11: #{basic_block_forward.1} parent=5 // pred_region
      %s161 = ssub.s32 %s11, 1
      // Predicated region
      $region13: #{basic_block_forward.1} parent=11 // pred_check
        %p162 = pneg %p58
      $region14: #{basic_block_forward.1} parent=11 // pred_check_branch
        %164 = sbr.rel (%p162) target = $region16
      $region15: #{basic_block_forward.1} parent=11 // pred_region
        _
      $region16: #{basic_block_forward.1} parent=11 // pred_fallthru
        _
      // Predicated region
      $region17: #{basic_block_forward.1} parent=11 // pred_check
        %p165 = pneg %p79
      $region18: #{basic_block_forward.1} parent=11 // pred_check_branch
        %167 = sbr.rel (%p165) target = $region20
      $region19: #{basic_block_forward.1} parent=11 // pred_region
        _
      $region20: #{basic_block_forward.1} parent=11 // pred_fallthru
        _
      // Predicated region
      $region21: #{basic_block_forward.1} parent=11 // pred_check
        %p168 = pneg %p100
      $region22: #{basic_block_forward.1} parent=11 // pred_check_branch
        %170 = sbr.rel (%p168) target = $region24
      $region23: #{basic_block_forward.1} parent=11 // pred_region
        _
      $region24: #{basic_block_forward.1} parent=11 // pred_fallthru
        _
      // Predicated region
      $region25: #{basic_block_forward.1} parent=11 // pred_check
        %p171 = pneg %p121
      $region26: #{basic_block_forward.1} parent=11 // pred_check_branch
        %173 = sbr.rel (%p171) target = $region28
      $region27: #{basic_block_forward.1} parent=11 // pred_region
        _
      $region28: #{basic_block_forward.1} parent=11 // pred_fallthru
        _
    $region12: #{basic_block_forward.1} parent=5 // pred_fallthru
      _
    %p174 = scmp.lt.s32.totalorder %s11, 2
    // Predicated region
    $region29: #{basic_block_forward.1} parent=5 // pred_check
      %p175 = pneg %p174
    $region30: #{basic_block_forward.1} parent=5 // pred_check_branch
      %177 = sbr.rel (%p175) target = $region32
    $region31: #{basic_block_forward.1} parent=5 // pred_region
      // Predicated region
      $region33: #{basic_block_forward.1} parent=31 // pred_check
        %p178 = pneg %p31
      $region34: #{basic_block_forward.1} parent=31 // pred_check_branch
        %180 = sbr.rel (%p178) target = $region36
      $region35: #{basic_block_forward.1} parent=31 // pred_region
        %p181 = scmp.lt.s32.totalorder %s11, 1
        %s182 = scalar_select %p181, %s11, 1
        %s183 = smul.addr %s182, 8
        %s184 = smul.addr %s183, 4
        %s185 = scalar_lea.vmem %s0, %s184
      $region36: #{basic_block_forward.1} parent=31 // pred_fallthru
        _
    $region32: #{basic_block_forward.1} parent=5 // pred_fallthru
      _
    %p186 = scmp.le.s32.totalorder 1, %s11
    %p187 = scmp.lt.s32.totalorder %s11, 3
    %p188 = pnand %p186, %p187
    %p189 = pneg %p188
    // Predicated region
    $region37: #{basic_block_forward.1} parent=5 // pred_check
      _
    $region38: #{basic_block_forward.1} parent=5 // pred_check_branch
      %191 = sbr.rel (%p188) target = $region40
    $region39: #{basic_block_forward.1} parent=5 // pred_region
      %s192 = ssub.s32 %s11, 1
      %p193 = scmp.lt.s32.totalorder %s16, 1
      %s194 = scalar_select %p193, %s16, 1
      %s195 = smul.addr %s194, 8
      %s196 = smul.addr %s195, 4
      %s197 = scalar_lea.vmem %s0, %s196
      %p198 = pneg %p37
      %p199 = pneg %p34
      %p200 = pneg %p58
      %p201 = pneg %p55
      %p202 = pneg %p79
      %p203 = pneg %p76
      %p204 = pneg %p100
      %p205 = pneg %p97
      %p206 = pneg %p121
      %p207 = pneg %p118
      %p208 = pneg %p147
      %p209 = pneg %p144
      %p210 = scmp.lt.s32.totalorder %s16, 1
      %s211 = scalar_select %p210, %s16, 1
      %s212 = smul.addr %s211, 8
      %s213 = smul.addr %s212, 8
      %s214 = scalar_lea.vmem %s5, %s213
      %p215 = scmp.lt.s32.totalorder %s16, 1
      %s216 = scalar_select %p215, %s16, 1
      %s217 = smul.addr %s216, 8
      %s218 = smul.addr %s217, 4
      %s219 = scalar_lea.vmem %s0, %s218
      %p220 = scmp.lt.s32.totalorder %s16, 1
      %s221 = scalar_select %p220, %s16, 1
      %s222 = smul.addr %s221, 8
      %s223 = smul.addr %s222, 8
      %s224 = scalar_lea.vmem %s5, %s223
      %v226 = vld [vmem:[%s219] sm:$0xf]
      %v227 = vld [vmem:[%s219 + $0x4] sm:$0xf]
      %v228 = vld [vmem:[%s219 + $0x8] sm:$0xf]
      %v229 = vld [vmem:[%s219 + $0xc] sm:$0xf]
      %v230 = vld [vmem:[%s219 + $0x10] sm:$0xf]
      %v231 = vld [vmem:[%s219 + $0x14] sm:$0xf]
      %v232 = vld [vmem:[%s219 + $0x18] sm:$0xf]
      %v233 = vld [vmem:[%s219 + $0x1c] sm:$0xf]
      %v234 = vld [vmem:[%s1] sm:$0xf]
      %v235 = vld [vmem:[%s1 + $0x4] sm:$0xf]
      %v236 = vld [vmem:[%s1 + $0x8] sm:$0xf]
      %v237 = vld [vmem:[%s1 + $0xc] sm:$0xf]
      %v238 = vld [vmem:[%s1 + $0x10] sm:$0x3]
      %v239 = vld [vmem:[%s4] sm:$0x1]
      %v240 = vlaneseq
      %v241 = vshrl.u32 %v240, 7
      %v242 = vsub.s32 0, %v241
      %v243 = vrot.slane %v239, %v242
      %v252 = vunpack.c.l.b16 %v226
      %v253 = vunpack.c.l.b16 %v227
      %v254 = vunpack.c.l.b16 %v228
      %v255 = vunpack.c.l.b16 %v229
      %v256 = vunpack.c.l.b16 %v230
      %v257 = vunpack.c.l.b16 %v231
      %v258 = vunpack.c.l.b16 %v232
      %v259 = vunpack.c.l.b16 %v233
      %v260 = vpack.c.b16 %v253, %v252
      %v261 = vpack.c.b16 %v255, %v254
      %v262 = vpack.c.b16 %v257, %v256
      %v263 = vpack.c.b16 %v259, %v258
      %v269 = vunpack.c.l.b16 %v234
      %v270 = vunpack.c.l.b16 %v235
      %v271 = vunpack.c.l.b16 %v236
      %v272 = vunpack.c.l.b16 %v237
      %v273 = vunpack.c.l.b16 %v238
      %v274 = vpack.c.b16 %v270, %v269
      %v275 = vpack.c.b16 %v272, %v271
      %v276 = vpack.c.b16 %v273, %v273
      %vm279 = vcmask 293888
      %v281 = vsel %vm279, %v260, 0
      %v284 = vsel %vm279, %v261, 0
      %v287 = vsel %vm279, %v262, 0
      %v290 = vsel %vm279, %v263, 0
      %vm292 = vcmask 1041408
      %v294 = vsel %vm292, %v276, 0
      %296 = vmatprep.subr.bf16.mxu0 0
      %297 = vmatpush1.bf16.msra.mxu0 0
      %298 = vmatprep.subr.bf16.mxu0 0
      %299 = vmatpush1.bf16.msra.mxu0 0
      %300 = vmatprep.subr.bf16.mxu0 0
      %301 = vmatpush1.bf16.msra.mxu0 0
      %302 = vmatprep.subr.bf16.mxu0 0
      %303 = vmatpush1.bf16.msra.mxu0 0
      %304 = vmatprep.subr.bf16.mxu0 0
      %305 = vmatpush1.bf16.msra.mxu0 0
      %306 = vmatprep.subr.bf16.mxu0 0
      %307 = vmatpush1.bf16.msra.mxu0 %v294
      %308 = vmatprep.subr.bf16.mxu0 0
      %309 = vmatpush1.bf16.msra.mxu0 %v275
      %310 = vmatprep.subr.bf16.mxu0 0
      %311 = vmatpush1.bf16.msra.mxu0 %v274
      %312 = vmatprep.subr.bf16.mxu0 0
      %313 = vmatpush2.bf16.msra.mxu0 0
      %314 = vmatprep.subr.bf16.mxu0 0
      %315 = vmatpush2.bf16.msra.mxu0 0
      %316 = vmatprep.subr.bf16.mxu0 0
      %317 = vmatpush2.bf16.msra.mxu0 0
      %318 = vmatprep.subr.bf16.mxu0 0
      %319 = vmatpush2.bf16.msra.mxu0 0
      %320 = vmatprep.subr.bf16.mxu0 0
      %321 = vmatpush2.bf16.msra.mxu0 0
      %322 = vmatprep.subr.bf16.mxu0 0
      %323 = vmatpush2.bf16.msra.mxu0 0
      %324 = vmatprep.subr.bf16.mxu0 0
      %325 = vmatpush2.bf16.msra.mxu0 0
      %326 = vmatprep.subr.bf16.mxu0 0
      %327 = vmatpush2.bf16.msra.mxu0 0
      %328 = vmatprep.mubr.bf16.mxu0 0
      %329 = vmatmul.mubr.bf16.gmra.mxu0 %v281
      %v330 = vpop.f32.mrf.mxu0
      %v331 = vadd.f32 %v243, %v330
      %v332 = vpop.f32.mrf.mxu0
      %v333 = vpop.f32.mrf.mxu0
      %v334 = vadd.f32 %v243, %v333
      %v335 = vpop.f32.mrf.mxu0
      %336 = vmatprep.mubr.bf16.mxu0 0
      %337 = vmatmul.mubr.bf16.gmra.mxu0 %v284
      %v338 = vpop.f32.mrf.mxu0
      %v339 = vadd.f32 %v243, %v338
      %v340 = vpop.f32.mrf.mxu0
      %v341 = vpop.f32.mrf.mxu0
      %v342 = vadd.f32 %v243, %v341
      %v343 = vpop.f32.mrf.mxu0
      %344 = vmatprep.mubr.bf16.mxu0 0
      %345 = vmatmul.mubr.bf16.gmra.mxu0 %v287
      %v346 = vpop.f32.mrf.mxu0
      %v347 = vadd.f32 %v243, %v346
      %v348 = vpop.f32.mrf.mxu0
      %v349 = vpop.f32.mrf.mxu0
      %v350 = vadd.f32 %v243, %v349
      %v351 = vpop.f32.mrf.mxu0
      %352 = vmatprep.mubr.bf16.mxu0 0
      %353 = vmatmul.mubr.bf16.gmra.mxu0 %v290
      %v354 = vpop.f32.mrf.mxu0
      %v355 = vadd.f32 %v243, %v354
      %v356 = vpop.f32.mrf.mxu0
      %v357 = vpop.f32.mrf.mxu0
      %v358 = vadd.f32 %v243, %v357
      %v359 = vpop.f32.mrf.mxu0
      %360 = vdwg.mxu0
      %v361 = vmax.f32 %v331, 0.0
      %v362 = vmax.f32 %v334, 0.0
      %v363 = vmax.f32 %v339, 0.0
      %v364 = vmax.f32 %v342, 0.0
      %v365 = vmax.f32 %v347, 0.0
      %v366 = vmax.f32 %v350, 0.0
      %v367 = vmax.f32 %v355, 0.0
      %v368 = vmax.f32 %v358, 0.0
      %369 = vst [vmem:[#allocation2] sm:$0xf] 0
      %370 = vst [vmem:[#allocation2 + $0x4] sm:$0x1] 0
      %s371 = scalar_lea.vmem [#allocation2], 72
      %372 = vst [vmem:[%s371] sm:$0xf] 0
      %373 = vst [vmem:[%s371 + $0x4] sm:$0x1] 0
      %s374 = scalar_lea.vmem [#allocation2], 8
      %vm375 = vcmask 1040384
      %vm376 = vsmask.f32 256
      %vm377 = vmand %vm375, %vm376
      %v378 = vld [vmem:[%s374] sm:$0x1]
      %v379 = vsel %vm377, 0, %v378
      %380 = vst [vmem:[%s374] sm:$0x1] %v379
      %v381 = vld [vmem:[%s374 + $0x8] sm:$0x1]
      %v382 = vsel %vm377, 0, %v381
      %383 = vst [vmem:[%s374 + $0x8] sm:$0x1] %v382
      %v384 = vld [vmem:[%s374 + $0x10] sm:$0x1]
      %v385 = vsel %vm377, 0, %v384
      %386 = vst [vmem:[%s374 + $0x10] sm:$0x1] %v385
      %v387 = vld [vmem:[%s374 + $0x18] sm:$0x1]
      %v388 = vsel %vm377, 0, %v387
      %389 = vst [vmem:[%s374 + $0x18] sm:$0x1] %v388
      %v390 = vld [vmem:[%s374 + $0x20] sm:$0x1]
      %v391 = vsel %vm377, 0, %v390
      %392 = vst [vmem:[%s374 + $0x20] sm:$0x1] %v391
      %v393 = vld [vmem:[%s374 + $0x28] sm:$0x1]
      %v394 = vsel %vm377, 0, %v393
      %395 = vst [vmem:[%s374 + $0x28] sm:$0x1] %v394
      %v396 = vld [vmem:[%s374 + $0x30] sm:$0x1]
      %v397 = vsel %vm377, 0, %v396
      %398 = vst [vmem:[%s374 + $0x30] sm:$0x1] %v397
      %v399 = vld [vmem:[%s374 + $0x38] sm:$0x1]
      %v400 = vsel %vm377, 0, %v399
      %401 = vst [vmem:[%s374 + $0x38] sm:$0x1] %v400
      %vm402 = vsmask.f32 7938
      %vm403 = vmand %vm375, %vm402
      %v404 = vld [vmem:[%s374 + $0x4] sm:$0x1]
      %v405 = vsel %vm403, 0, %v404
      %406 = vst [vmem:[%s374 + $0x4] sm:$0x1] %v405
      %v407 = vld [vmem:[%s374 + $0xc] sm:$0x1]
      %v408 = vsel %vm403, 0, %v407
      %409 = vst [vmem:[%s374 + $0xc] sm:$0x1] %v408
      %v410 = vld [vmem:[%s374 + $0x14] sm:$0x1]
      %v411 = vsel %vm403, 0, %v410
      %412 = vst [vmem:[%s374 + $0x14] sm:$0x1] %v411
      %v413 = vld [vmem:[%s374 + $0x1c] sm:$0x1]
      %v414 = vsel %vm403, 0, %v413
      %415 = vst [vmem:[%s374 + $0x1c] sm:$0x1] %v414
      %v416 = vld [vmem:[%s374 + $0x24] sm:$0x1]
      %v417 = vsel %vm403, 0, %v416
      %418 = vst [vmem:[%s374 + $0x24] sm:$0x1] %v417
      %v419 = vld [vmem:[%s374 + $0x2c] sm:$0x1]
      %v420 = vsel %vm403, 0, %v419
      %421 = vst [vmem:[%s374 + $0x2c] sm:$0x1] %v420
      %v422 = vld [vmem:[%s374 + $0x34] sm:$0x1]
      %v423 = vsel %vm403, 0, %v422
      %424 = vst [vmem:[%s374 + $0x34] sm:$0x1] %v423
      %v425 = vld [vmem:[%s374 + $0x3c] sm:$0x1]
      %v426 = vsel %vm403, 0, %v425
      %427 = vst [vmem:[%s374 + $0x3c] sm:$0x1] %v426
      %v428 = vpack.c.bf16 %v362, %v361
      %v429 = vpack.c.bf16 %v364, %v363
      %v430 = vpack.c.bf16 %v366, %v365
      %v431 = vpack.c.bf16 %v368, %v367
      %v436 = vunpack.c.l.b16 %v428
      %v437 = vunpack.c.h.b16 %v428
      %v438 = vunpack.c.l.b16 %v429
      %v439 = vunpack.c.h.b16 %v429
      %v440 = vunpack.c.l.b16 %v430
      %v441 = vunpack.c.h.b16 %v430
      %v442 = vunpack.c.l.b16 %v431
      %v443 = vunpack.c.h.b16 %v431
      %v444 = vpack.c.b16 %v436, %v436
      %v445 = vpack.c.b16 %v437, %v437
      %v446 = vpack.c.b16 %v438, %v438
      %v447 = vpack.c.b16 %v439, %v439
      %v448 = vpack.c.b16 %v440, %v440
      %v449 = vpack.c.b16 %v441, %v441
      %v450 = vpack.c.b16 %v442, %v442
      %v451 = vpack.c.b16 %v443, %v443
      %v453 = vshrl.u32 %v444, 16
      %v455 = vrot.slane %v453, 7
      %v456 = vshll.u32 %v444, 16
      %v458 = vor.u32 %v455, %v456
      %v459 = vrot.slane %v455, 4
      %v461 = vshrl.u32 %v445, 16
      %v463 = vrot.slane %v461, 7
      %v464 = vshll.u32 %v445, 16
      %v466 = vor.u32 %v463, %v464
      %v467 = vrot.slane %v463, 4
      %v469 = vshrl.u32 %v446, 16
      %v471 = vrot.slane %v469, 7
      %v472 = vshll.u32 %v446, 16
      %v474 = vor.u32 %v471, %v472
      %v475 = vrot.slane %v471, 4
      %v477 = vshrl.u32 %v447, 16
      %v479 = vrot.slane %v477, 7
      %v480 = vshll.u32 %v447, 16
      %v482 = vor.u32 %v479, %v480
      %v483 = vrot.slane %v479, 4
      %v485 = vshrl.u32 %v448, 16
      %v487 = vrot.slane %v485, 7
      %v488 = vshll.u32 %v448, 16
      %v490 = vor.u32 %v487, %v488
      %v491 = vrot.slane %v487, 4
      %v493 = vshrl.u32 %v449, 16
      %v495 = vrot.slane %v493, 7
      %v496 = vshll.u32 %v449, 16
      %v498 = vor.u32 %v495, %v496
      %v499 = vrot.slane %v495, 4
      %v501 = vshrl.u32 %v450, 16
      %v503 = vrot.slane %v501, 7
      %v504 = vshll.u32 %v450, 16
      %v506 = vor.u32 %v503, %v504
      %v507 = vrot.slane %v503, 4
      %v509 = vshrl.u32 %v451, 16
      %v511 = vrot.slane %v509, 7
      %v512 = vshll.u32 %v451, 16
      %v514 = vor.u32 %v511, %v512
      %v515 = vrot.slane %v511, 4
      %vm532 = vcmask 1043456
      %vm533 = vmand %vm532, %vm402
      %v534 = vld [vmem:[%s374] sm:$0xf]
      %v535 = vsel %vm533, %v458, %v534
      %536 = vst [vmem:[%s374] sm:$0xf] %v535
      %v537 = vld [vmem:[%s374 + $0x4] sm:$0x1]
      %v538 = vsel %vm377, %v459, %v537
      %539 = vst [vmem:[%s374 + $0x4] sm:$0x1] %v538
      %v540 = vld [vmem:[%s374 + $0x8] sm:$0xf]
      %v541 = vsel %vm533, %v466, %v540
      %542 = vst [vmem:[%s374 + $0x8] sm:$0xf] %v541
      %v543 = vld [vmem:[%s374 + $0xc] sm:$0x1]
      %v544 = vsel %vm377, %v467, %v543
      %545 = vst [vmem:[%s374 + $0xc] sm:$0x1] %v544
      %v546 = vld [vmem:[%s374 + $0x10] sm:$0xf]
      %v547 = vsel %vm533, %v474, %v546
      %548 = vst [vmem:[%s374 + $0x10] sm:$0xf] %v547
      %v549 = vld [vmem:[%s374 + $0x14] sm:$0x1]
      %v550 = vsel %vm377, %v475, %v549
      %551 = vst [vmem:[%s374 + $0x14] sm:$0x1] %v550
      %v552 = vld [vmem:[%s374 + $0x18] sm:$0xf]
      %v553 = vsel %vm533, %v482, %v552
      %554 = vst [vmem:[%s374 + $0x18] sm:$0xf] %v553
      %v555 = vld [vmem:[%s374 + $0x1c] sm:$0x1]
      %v556 = vsel %vm377, %v483, %v555
      %557 = vst [vmem:[%s374 + $0x1c] sm:$0x1] %v556
      %v558 = vld [vmem:[%s374 + $0x20] sm:$0xf]
      %v559 = vsel %vm533, %v490, %v558
      %560 = vst [vmem:[%s374 + $0x20] sm:$0xf] %v559
      %v561 = vld [vmem:[%s374 + $0x24] sm:$0x1]
      %v562 = vsel %vm377, %v491, %v561
      %563 = vst [vmem:[%s374 + $0x24] sm:$0x1] %v562
      %v564 = vld [vmem:[%s374 + $0x28] sm:$0xf]
      %v565 = vsel %vm533, %v498, %v564
      %566 = vst [vmem:[%s374 + $0x28] sm:$0xf] %v565
      %v567 = vld [vmem:[%s374 + $0x2c] sm:$0x1]
      %v568 = vsel %vm377, %v499, %v567
      %569 = vst [vmem:[%s374 + $0x2c] sm:$0x1] %v568
      %v570 = vld [vmem:[%s374 + $0x30] sm:$0xf]
      %v571 = vsel %vm533, %v506, %v570
      %572 = vst [vmem:[%s374 + $0x30] sm:$0xf] %v571
      %v573 = vld [vmem:[%s374 + $0x34] sm:$0x1]
      %v574 = vsel %vm377, %v507, %v573
      %575 = vst [vmem:[%s374 + $0x34] sm:$0x1] %v574
      %v576 = vld [vmem:[%s374 + $0x38] sm:$0xf]
      %v577 = vsel %vm533, %v514, %v576
      %578 = vst [vmem:[%s374 + $0x38] sm:$0xf] %v577
      %v579 = vld [vmem:[%s374 + $0x3c] sm:$0x1]
      %v580 = vsel %vm377, %v515, %v579
      %581 = vst [vmem:[%s374 + $0x3c] sm:$0x1] %v580
      %v582 = vld [vmem:[#allocation2] sm:$0xf]
      %v583 = vld [vmem:[#allocation2 + $0x8] sm:$0xf]
      %v584 = vld [vmem:[#allocation2 + $0x10] sm:$0xf]
      %v585 = vld [vmem:[#allocation2 + $0x18] sm:$0xf]
      %v586 = vld [vmem:[#allocation2 + $0x20] sm:$0xf]
      %v587 = vld [vmem:[#allocation2 + $0x28] sm:$0xf]
      %v588 = vld [vmem:[#allocation2 + $0x30] sm:$0xf]
      %v589 = vld [vmem:[#allocation2 + $0x38] sm:$0xf]
      %590 = vst [vmem:[#allocation3] sm:$0xf] %v582
      %591 = vst [vmem:[#allocation3 + $0x24] sm:$0xf] %v583
      %592 = vst [vmem:[#allocation3 + $0x48] sm:$0xf] %v584
      %593 = vst [vmem:[#allocation3 + $0x6c] sm:$0xf] %v585
      %594 = vst [vmem:[#allocation3 + $0x90] sm:$0xf] %v586
      %595 = vst [vmem:[#allocation3 + $0xb4] sm:$0xf] %v587
      %596 = vst [vmem:[#allocation3 + $0xd8] sm:$0xf] %v588
      %597 = vst [vmem:[#allocation3 + $0xfc] sm:$0xf] %v589
      %v598 = vld [vmem:[#allocation2] sm:$0xf]
      %v599 = vld [vmem:[#allocation2 + $0x4] sm:$0x1]
      %v600 = vld [vmem:[#allocation2 + $0x8] sm:$0xf]
      %v601 = vld [vmem:[#allocation2 + $0xc] sm:$0x1]
      %v602 = vld [vmem:[#allocation2 + $0x10] sm:$0xf]
      %v603 = vld [vmem:[#allocation2 + $0x14] sm:$0x1]
      %v604 = vld [vmem:[#allocation2 + $0x18] sm:$0xf]
      %v605 = vld [vmem:[#allocation2 + $0x1c] sm:$0x1]
      %v606 = vld [vmem:[#allocation2 + $0x20] sm:$0xf]
      %v607 = vld [vmem:[#allocation2 + $0x24] sm:$0x1]
      %v608 = vld [vmem:[#allocation2 + $0x28] sm:$0xf]
      %v609 = vld [vmem:[#allocation2 + $0x2c] sm:$0x1]
      %v610 = vld [vmem:[#allocation2 + $0x30] sm:$0xf]
      %v611 = vld [vmem:[#allocation2 + $0x34] sm:$0x1]
      %v612 = vld [vmem:[#allocation2 + $0x38] sm:$0xf]
      %v613 = vld [vmem:[#allocation2 + $0x3c] sm:$0x1]
      %vm614 = vsmask.f32 3328
      %vm615 = vsmask.f32 7440
      %vm616 = vmor %vm614, %vm615
      %v618 = vshrl.u32 %v598, 16
      %v620 = vrot.slane %v618, 4
      %v621 = vshll.u32 %v598, 16
      %v623 = vrot.slane %v621, 5
      %v624 = vor.u32 %v620, %v623
      %v625 = vrot.slane %v624, 4
      %v627 = vshll.u32 %v599, 16
      %v629 = vrot.slane %v627, 5
      %v630 = vsel %vm616, %v625, %v629
      %v632 = vshrl.u32 %v600, 16
      %v634 = vrot.slane %v632, 4
      %v635 = vshll.u32 %v600, 16
      %v637 = vrot.slane %v635, 5
      %v638 = vor.u32 %v634, %v637
      %v639 = vrot.slane %v638, 4
      %v641 = vshll.u32 %v601, 16
      %v643 = vrot.slane %v641, 5
      %v644 = vsel %vm616, %v639, %v643
      %v646 = vshrl.u32 %v602, 16
      %v648 = vrot.slane %v646, 4
      %v649 = vshll.u32 %v602, 16
      %v651 = vrot.slane %v649, 5
      %v652 = vor.u32 %v648, %v651
      %v653 = vrot.slane %v652, 4
      %v655 = vshll.u32 %v603, 16
      %v657 = vrot.slane %v655, 5
      %v658 = vsel %vm616, %v653, %v657
      %v660 = vshrl.u32 %v604, 16
      %v662 = vrot.slane %v660, 4
      %v663 = vshll.u32 %v604, 16
      %v665 = vrot.slane %v663, 5
      %v666 = vor.u32 %v662, %v665
      %v667 = vrot.slane %v666, 4
      %v669 = vshll.u32 %v605, 16
      %v671 = vrot.slane %v669, 5
      %v672 = vsel %vm616, %v667, %v671
      %v674 = vshrl.u32 %v606, 16
      %v676 = vrot.slane %v674, 4
      %v677 = vshll.u32 %v606, 16
      %v679 = vrot.slane %v677, 5
      %v680 = vor.u32 %v676, %v679
      %v681 = vrot.slane %v680, 4
      %v683 = vshll.u32 %v607, 16
      %v685 = vrot.slane %v683, 5
      %v686 = vsel %vm616, %v681, %v685
      %v688 = vshrl.u32 %v608, 16
      %v690 = vrot.slane %v688, 4
      %v691 = vshll.u32 %v608, 16
      %v693 = vrot.slane %v691, 5
      %v694 = vor.u32 %v690, %v693
      %v695 = vrot.slane %v694, 4
      %v697 = vshll.u32 %v609, 16
      %v699 = vrot.slane %v697, 5
      %v700 = vsel %vm616, %v695, %v699
      %v702 = vshrl.u32 %v610, 16
      %v704 = vrot.slane %v702, 4
      %v705 = vshll.u32 %v610, 16
      %v707 = vrot.slane %v705, 5
      %v708 = vor.u32 %v704, %v707
      %v709 = vrot.slane %v708, 4
      %v711 = vshll.u32 %v611, 16
      %v713 = vrot.slane %v711, 5
      %v714 = vsel %vm616, %v709, %v713
      %v716 = vshrl.u32 %v612, 16
      %v718 = vrot.slane %v716, 4
      %v719 = vshll.u32 %v612, 16
      %v721 = vrot.slane %v719, 5
      %v722 = vor.u32 %v718, %v721
      %v723 = vrot.slane %v722, 4
      %v725 = vshll.u32 %v613, 16
      %v727 = vrot.slane %v725, 5
      %v728 = vsel %vm616, %v723, %v727
      %737 = vst [vmem:[#allocation3 + $0x4] sm:$0xf] %v630
      %738 = vst [vmem:[#allocation3 + $0x28] sm:$0xf] %v644
      %739 = vst [vmem:[#allocation3 + $0x4c] sm:$0xf] %v658
      %740 = vst [vmem:[#allocation3 + $0x70] sm:$0xf] %v672
      %741 = vst [vmem:[#allocation3 + $0x94] sm:$0xf] %v686
      %742 = vst [vmem:[#allocation3 + $0xb8] sm:$0xf] %v700
      %743 = vst [vmem:[#allocation3 + $0xdc] sm:$0xf] %v714
      %744 = vst [vmem:[#allocation3 + $0x100] sm:$0xf] %v728
      %v745 = vld [vmem:[#allocation2] sm:$0xe]
      %v746 = vld [vmem:[#allocation2 + $0x4] sm:$0x1]
      %v747 = vld [vmem:[#allocation2 + $0x8] sm:$0xe]
      %v748 = vld [vmem:[#allocation2 + $0xc] sm:$0x1]
      %v749 = vld [vmem:[#allocation2 + $0x10] sm:$0xe]
      %v750 = vld [vmem:[#allocation2 + $0x14] sm:$0x1]
      %v751 = vld [vmem:[#allocation2 + $0x18] sm:$0xe]
      %v752 = vld [vmem:[#allocation2 + $0x1c] sm:$0x1]
      %v753 = vld [vmem:[#allocation2 + $0x20] sm:$0xe]
      %v754 = vld [vmem:[#allocation2 + $0x24] sm:$0x1]
      %v755 = vld [vmem:[#allocation2 + $0x28] sm:$0xe]
      %v756 = vld [vmem:[#allocation2 + $0x2c] sm:$0x1]
      %v757 = vld [vmem:[#allocation2 + $0x30] sm:$0xe]
      %v758 = vld [vmem:[#allocation2 + $0x34] sm:$0x1]
      %v759 = vld [vmem:[#allocation2 + $0x38] sm:$0xe]
      %v760 = vld [vmem:[#allocation2 + $0x3c] sm:$0x1]
      %vm777 = vcmask 1042432
      %vm778 = vcmask 1046532
      %vm779 = vmor %vm777, %vm778
      %v780 = vrot.slane %v745, 5
      %v781 = vrot.slane %v780, 4
      %v782 = vrot.slane %v746, 5
      %v783 = vsel %vm779, %v781, %v782
      %v784 = vrot.slane %v747, 5
      %v785 = vrot.slane %v784, 4
      %v786 = vrot.slane %v748, 5
      %v787 = vsel %vm779, %v785, %v786
      %v788 = vrot.slane %v749, 5
      %v789 = vrot.slane %v788, 4
      %v790 = vrot.slane %v750, 5
      %v791 = vsel %vm779, %v789, %v790
      %v792 = vrot.slane %v751, 5
      %v793 = vrot.slane %v792, 4
      %v794 = vrot.slane %v752, 5
      %v795 = vsel %vm779, %v793, %v794
      %v796 = vrot.slane %v753, 5
      %v797 = vrot.slane %v796, 4
      %v798 = vrot.slane %v754, 5
      %v799 = vsel %vm779, %v797, %v798
      %v800 = vrot.slane %v755, 5
      %v801 = vrot.slane %v800, 4
      %v802 = vrot.slane %v756, 5
      %v803 = vsel %vm779, %v801, %v802
      %v804 = vrot.slane %v757, 5
      %v805 = vrot.slane %v804, 4
      %v806 = vrot.slane %v758, 5
      %v807 = vsel %vm779, %v805, %v806
      %v808 = vrot.slane %v759, 5
      %v809 = vrot.slane %v808, 4
      %v810 = vrot.slane %v760, 5
      %v811 = vsel %vm779, %v809, %v810
      %820 = vst [vmem:[#allocation3 + $0x8] sm:$0xf] %v783
      %821 = vst [vmem:[#allocation3 + $0x2c] sm:$0xf] %v787
      %822 = vst [vmem:[#allocation3 + $0x50] sm:$0xf] %v791
      %823 = vst [vmem:[#allocation3 + $0x74] sm:$0xf] %v795
      %824 = vst [vmem:[#allocation3 + $0x98] sm:$0xf] %v799
      %825 = vst [vmem:[#allocation3 + $0xbc] sm:$0xf] %v803
      %826 = vst [vmem:[#allocation3 + $0xe0] sm:$0xf] %v807
      %827 = vst [vmem:[#allocation3 + $0x104] sm:$0xf] %v811
      %v828 = vld [vmem:[%s374] sm:$0xf]
      %v829 = vld [vmem:[%s374 + $0x8] sm:$0xf]
      %v830 = vld [vmem:[%s374 + $0x10] sm:$0xf]
      %v831 = vld [vmem:[%s374 + $0x18] sm:$0xf]
      %v832 = vld [vmem:[%s374 + $0x20] sm:$0xf]
      %v833 = vld [vmem:[%s374 + $0x28] sm:$0xf]
      %v834 = vld [vmem:[%s374 + $0x30] sm:$0xf]
      %v835 = vld [vmem:[%s374 + $0x38] sm:$0xf]
      %836 = vst [vmem:[#allocation3 + $0xc] sm:$0xf] %v828
      %837 = vst [vmem:[#allocation3 + $0x30] sm:$0xf] %v829
      %838 = vst [vmem:[#allocation3 + $0x54] sm:$0xf] %v830
      %839 = vst [vmem:[#allocation3 + $0x78] sm:$0xf] %v831
      %840 = vst [vmem:[#allocation3 + $0x9c] sm:$0xf] %v832
      %841 = vst [vmem:[#allocation3 + $0xc0] sm:$0xf] %v833
      %842 = vst [vmem:[#allocation3 + $0xe4] sm:$0xf] %v834
      %843 = vst [vmem:[#allocation3 + $0x108] sm:$0xf] %v835
      %v844 = vld [vmem:[%s374] sm:$0xf]
      %v845 = vld [vmem:[%s374 + $0x4] sm:$0x1]
      %v846 = vld [vmem:[%s374 + $0x8] sm:$0xf]
      %v847 = vld [vmem:[%s374 + $0xc] sm:$0x1]
      %v848 = vld [vmem:[%s374 + $0x10] sm:$0xf]
      %v849 = vld [vmem:[%s374 + $0x14] sm:$0x1]
      %v850 = vld [vmem:[%s374 + $0x18] sm:$0xf]
      %v851 = vld [vmem:[%s374 + $0x1c] sm:$0x1]
      %v852 = vld [vmem:[%s374 + $0x20] sm:$0xf]
      %v853 = vld [vmem:[%s374 + $0x24] sm:$0x1]
      %v854 = vld [vmem:[%s374 + $0x28] sm:$0xf]
      %v855 = vld [vmem:[%s374 + $0x2c] sm:$0x1]
      %v856 = vld [vmem:[%s374 + $0x30] sm:$0xf]
      %v857 = vld [vmem:[%s374 + $0x34] sm:$0x1]
      %v858 = vld [vmem:[%s374 + $0x38] sm:$0xf]
      %v859 = vld [vmem:[%s374 + $0x3c] sm:$0x1]
      %v861 = vshrl.u32 %v844, 16
      %v863 = vrot.slane %v861, 4
      %v864 = vshll.u32 %v844, 16
      %v866 = vrot.slane %v864, 5
      %v867 = vor.u32 %v863, %v866
      %v868 = vrot.slane %v867, 4
      %v870 = vshll.u32 %v845, 16
      %v872 = vrot.slane %v870, 5
      %v873 = vsel %vm616, %v868, %v872
      %v875 = vshrl.u32 %v846, 16
      %v877 = vrot.slane %v875, 4
      %v878 = vshll.u32 %v846, 16
      %v880 = vrot.slane %v878, 5
      %v881 = vor.u32 %v877, %v880
      %v882 = vrot.slane %v881, 4
      %v884 = vshll.u32 %v847, 16
      %v886 = vrot.slane %v884, 5
      %v887 = vsel %vm616, %v882, %v886
      %v889 = vshrl.u32 %v848, 16
      %v891 = vrot.slane %v889, 4
      %v892 = vshll.u32 %v848, 16
      %v894 = vrot.slane %v892, 5
      %v895 = vor.u32 %v891, %v894
      %v896 = vrot.slane %v895, 4
      %v898 = vshll.u32 %v849, 16
      %v900 = vrot.slane %v898, 5
      %v901 = vsel %vm616, %v896, %v900
      %v903 = vshrl.u32 %v850, 16
      %v905 = vrot.slane %v903, 4
      %v906 = vshll.u32 %v850, 16
      %v908 = vrot.slane %v906, 5
      %v909 = vor.u32 %v905, %v908
      %v910 = vrot.slane %v909, 4
      %v912 = vshll.u32 %v851, 16
      %v914 = vrot.slane %v912, 5
      %v915 = vsel %vm616, %v910, %v914
      %v917 = vshrl.u32 %v852, 16
      %v919 = vrot.slane %v917, 4
      %v920 = vshll.u32 %v852, 16
      %v922 = vrot.slane %v920, 5
      %v923 = vor.u32 %v919, %v922
      %v924 = vrot.slane %v923, 4
      %v926 = vshll.u32 %v853, 16
      %v928 = vrot.slane %v926, 5
      %v929 = vsel %vm616, %v924, %v928
      %v931 = vshrl.u32 %v854, 16
      %v933 = vrot.slane %v931, 4
      %v934 = vshll.u32 %v854, 16
      %v936 = vrot.slane %v934, 5
      %v937 = vor.u32 %v933, %v936
      %v938 = vrot.slane %v937, 4
      %v940 = vshll.u32 %v855, 16
      %v942 = vrot.slane %v940, 5
      %v943 = vsel %vm616, %v938, %v942
      %v945 = vshrl.u32 %v856, 16
      %v947 = vrot.slane %v945, 4
      %v948 = vshll.u32 %v856, 16
      %v950 = vrot.slane %v948, 5
      %v951 = vor.u32 %v947, %v950
      %v952 = vrot.slane %v951, 4
      %v954 = vshll.u32 %v857, 16
      %v956 = vrot.slane %v954, 5
      %v957 = vsel %vm616, %v952, %v956
      %v959 = vshrl.u32 %v858, 16
      %v961 = vrot.slane %v959, 4
      %v962 = vshll.u32 %v858, 16
      %v964 = vrot.slane %v962, 5
      %v965 = vor.u32 %v961, %v964
      %v966 = vrot.slane %v965, 4
      %v968 = vshll.u32 %v859, 16
      %v970 = vrot.slane %v968, 5
      %v971 = vsel %vm616, %v966, %v970
      %980 = vst [vmem:[#allocation3 + $0x10] sm:$0xf] %v873
      %981 = vst [vmem:[#allocation3 + $0x34] sm:$0xf] %v887
      %982 = vst [vmem:[#allocation3 + $0x58] sm:$0xf] %v901
      %983 = vst [vmem:[#allocation3 + $0x7c] sm:$0xf] %v915
      %984 = vst [vmem:[#allocation3 + $0xa0] sm:$0xf] %v929
      %985 = vst [vmem:[#allocation3 + $0xc4] sm:$0xf] %v943
      %986 = vst [vmem:[#allocation3 + $0xe8] sm:$0xf] %v957
      %987 = vst [vmem:[#allocation3 + $0x10c] sm:$0xf] %v971
      %v988 = vld [vmem:[%s374] sm:$0xe]
      %v989 = vld [vmem:[%s374 + $0x4] sm:$0x1]
      %v990 = vld [vmem:[%s374 + $0x8] sm:$0xe]
      %v991 = vld [vmem:[%s374 + $0xc] sm:$0x1]
      %v992 = vld [vmem:[%s374 + $0x10] sm:$0xe]
      %v993 = vld [vmem:[%s374 + $0x14] sm:$0x1]
      %v994 = vld [vmem:[%s374 + $0x18] sm:$0xe]
      %v995 = vld [vmem:[%s374 + $0x1c] sm:$0x1]
      %v996 = vld [vmem:[%s374 + $0x20] sm:$0xe]
      %v997 = vld [vmem:[%s374 + $0x24] sm:$0x1]
      %v998 = vld [vmem:[%s374 + $0x28] sm:$0xe]
      %v999 = vld [vmem:[%s374 + $0x2c] sm:$0x1]
      %v1000 = vld [vmem:[%s374 + $0x30] sm:$0xe]
      %v1001 = vld [vmem:[%s374 + $0x34] sm:$0x1]
      %v1002 = vld [vmem:[%s374 + $0x38] sm:$0xe]
      %v1003 = vld [vmem:[%s374 + $0x3c] sm:$0x1]
      %v1020 = vrot.slane %v988, 5
      %v1021 = vrot.slane %v1020, 4
      %v1022 = vrot.slane %v989, 5
      %v1023 = vsel %vm779, %v1021, %v1022
      %v1024 = vrot.slane %v990, 5
      %v1025 = vrot.slane %v1024, 4
      %v1026 = vrot.slane %v991, 5
      %v1027 = vsel %vm779, %v1025, %v1026
      %v1028 = vrot.slane %v992, 5
      %v1029 = vrot.slane %v1028, 4
      %v1030 = vrot.slane %v993, 5
      %v1031 = vsel %vm779, %v1029, %v1030
      %v1032 = vrot.slane %v994, 5
      %v1033 = vrot.slane %v1032, 4
      %v1034 = vrot.slane %v995, 5
      %v1035 = vsel %vm779, %v1033, %v1034
      %v1036 = vrot.slane %v996, 5
      %v1037 = vrot.slane %v1036, 4
      %v1038 = vrot.slane %v997, 5
      %v1039 = vsel %vm779, %v1037, %v1038
      %v1040 = vrot.slane %v998, 5
      %v1041 = vrot.slane %v1040, 4
      %v1042 = vrot.slane %v999, 5
      %v1043 = vsel %vm779, %v1041, %v1042
      %v1044 = vrot.slane %v1000, 5
      %v1045 = vrot.slane %v1044, 4
      %v1046 = vrot.slane %v1001, 5
      %v1047 = vsel %vm779, %v1045, %v1046
      %v1048 = vrot.slane %v1002, 5
      %v1049 = vrot.slane %v1048, 4
      %v1050 = vrot.slane %v1003, 5
      %v1051 = vsel %vm779, %v1049, %v1050
      %1060 = vst [vmem:[#allocation3 + $0x14] sm:$0xf] %v1023
      %1061 = vst [vmem:[#allocation3 + $0x38] sm:$0xf] %v1027
      %1062 = vst [vmem:[#allocation3 + $0x5c] sm:$0xf] %v1031
      %1063 = vst [vmem:[#allocation3 + $0x80] sm:$0xf] %v1035
      %1064 = vst [vmem:[#allocation3 + $0xa4] sm:$0xf] %v1039
      %1065 = vst [vmem:[#allocation3 + $0xc8] sm:$0xf] %v1043
      %1066 = vst [vmem:[#allocation3 + $0xec] sm:$0xf] %v1047
      %1067 = vst [vmem:[#allocation3 + $0x110] sm:$0xf] %v1051
      %s1068 = scalar_lea.vmem [#allocation2], 16
      %v1069 = vld [vmem:[%s1068] sm:$0xf]
      %v1070 = vld [vmem:[%s1068 + $0x8] sm:$0xf]
      %v1071 = vld [vmem:[%s1068 + $0x10] sm:$0xf]
      %v1072 = vld [vmem:[%s1068 + $0x18] sm:$0xf]
      %v1073 = vld [vmem:[%s1068 + $0x20] sm:$0xf]
      %v1074 = vld [vmem:[%s1068 + $0x28] sm:$0xf]
      %v1075 = vld [vmem:[%s1068 + $0x30] sm:$0xf]
      %v1076 = vld [vmem:[%s1068 + $0x38] sm:$0xf]
      %1077 = vst [vmem:[#allocation3 + $0x18] sm:$0xf] %v1069
      %1078 = vst [vmem:[#allocation3 + $0x3c] sm:$0xf] %v1070
      %1079 = vst [vmem:[#allocation3 + $0x60] sm:$0xf] %v1071
      %1080 = vst [vmem:[#allocation3 + $0x84] sm:$0xf] %v1072
      %1081 = vst [vmem:[#allocation3 + $0xa8] sm:$0xf] %v1073
      %1082 = vst [vmem:[#allocation3 + $0xcc] sm:$0xf] %v1074
      %1083 = vst [vmem:[#allocation3 + $0xf0] sm:$0xf] %v1075
      %1084 = vst [vmem:[#allocation3 + $0x114] sm:$0xf] %v1076
      %v1085 = vld [vmem:[%s1068] sm:$0xf]
      %v1086 = vld [vmem:[%s1068 + $0x4] sm:$0x1]
      %v1087 = vld [vmem:[%s1068 + $0x8] sm:$0xf]
      %v1088 = vld [vmem:[%s1068 + $0xc] sm:$0x1]
      %v1089 = vld [vmem:[%s1068 + $0x10] sm:$0xf]
      %v1090 = vld [vmem:[%s1068 + $0x14] sm:$0x1]
      %v1091 = vld [vmem:[%s1068 + $0x18] sm:$0xf]
      %v1092 = vld [vmem:[%s1068 + $0x1c] sm:$0x1]
      %v1093 = vld [vmem:[%s1068 + $0x20] sm:$0xf]
      %v1094 = vld [vmem:[%s1068 + $0x24] sm:$0x1]
      %v1095 = vld [vmem:[%s1068 + $0x28] sm:$0xf]
      %v1096 = vld [vmem:[%s1068 + $0x2c] sm:$0x1]
      %v1097 = vld [vmem:[%s1068 + $0x30] sm:$0xf]
      %v1098 = vld [vmem:[%s1068 + $0x34] sm:$0x1]
      %v1099 = vld [vmem:[%s1068 + $0x38] sm:$0xf]
      %v1100 = vld [vmem:[%s1068 + $0x3c] sm:$0x1]
      %v1102 = vshrl.u32 %v1085, 16
      %v1104 = vrot.slane %v1102, 4
      %v1105 = vshll.u32 %v1085, 16
      %v1107 = vrot.slane %v1105, 5
      %v1108 = vor.u32 %v1104, %v1107
      %v1109 = vrot.slane %v1108, 4
      %v1111 = vshll.u32 %v1086, 16
      %v1113 = vrot.slane %v1111, 5
      %v1114 = vsel %vm616, %v1109, %v1113
      %v1116 = vshrl.u32 %v1087, 16
      %v1118 = vrot.slane %v1116, 4
      %v1119 = vshll.u32 %v1087, 16
      %v1121 = vrot.slane %v1119, 5
      %v1122 = vor.u32 %v1118, %v1121
      %v1123 = vrot.slane %v1122, 4
      %v1125 = vshll.u32 %v1088, 16
      %v1127 = vrot.slane %v1125, 5
      %v1128 = vsel %vm616, %v1123, %v1127
      %v1130 = vshrl.u32 %v1089, 16
      %v1132 = vrot.slane %v1130, 4
      %v1133 = vshll.u32 %v1089, 16
      %v1135 = vrot.slane %v1133, 5
      %v1136 = vor.u32 %v1132, %v1135
      %v1137 = vrot.slane %v1136, 4
      %v1139 = vshll.u32 %v1090, 16
      %v1141 = vrot.slane %v1139, 5
      %v1142 = vsel %vm616, %v1137, %v1141
      %v1144 = vshrl.u32 %v1091, 16
      %v1146 = vrot.slane %v1144, 4
      %v1147 = vshll.u32 %v1091, 16
      %v1149 = vrot.slane %v1147, 5
      %v1150 = vor.u32 %v1146, %v1149
      %v1151 = vrot.slane %v1150, 4
      %v1153 = vshll.u32 %v1092, 16
      %v1155 = vrot.slane %v1153, 5
      %v1156 = vsel %vm616, %v1151, %v1155
      %v1158 = vshrl.u32 %v1093, 16
      %v1160 = vrot.slane %v1158, 4
      %v1161 = vshll.u32 %v1093, 16
      %v1163 = vrot.slane %v1161, 5
      %v1164 = vor.u32 %v1160, %v1163
      %v1165 = vrot.slane %v1164, 4
      %v1167 = vshll.u32 %v1094, 16
      %v1169 = vrot.slane %v1167, 5
      %v1170 = vsel %vm616, %v1165, %v1169
      %v1172 = vshrl.u32 %v1095, 16
      %v1174 = vrot.slane %v1172, 4
      %v1175 = vshll.u32 %v1095, 16
      %v1177 = vrot.slane %v1175, 5
      %v1178 = vor.u32 %v1174, %v1177
      %v1179 = vrot.slane %v1178, 4
      %v1181 = vshll.u32 %v1096, 16
      %v1183 = vrot.slane %v1181, 5
      %v1184 = vsel %vm616, %v1179, %v1183
      %v1186 = vshrl.u32 %v1097, 16
      %v1188 = vrot.slane %v1186, 4
      %v1189 = vshll.u32 %v1097, 16
      %v1191 = vrot.slane %v1189, 5
      %v1192 = vor.u32 %v1188, %v1191
      %v1193 = vrot.slane %v1192, 4
      %v1195 = vshll.u32 %v1098, 16
      %v1197 = vrot.slane %v1195, 5
      %v1198 = vsel %vm616, %v1193, %v1197
      %v1200 = vshrl.u32 %v1099, 16
      %v1202 = vrot.slane %v1200, 4
      %v1203 = vshll.u32 %v1099, 16
      %v1205 = vrot.slane %v1203, 5
      %v1206 = vor.u32 %v1202, %v1205
      %v1207 = vrot.slane %v1206, 4
      %v1209 = vshll.u32 %v1100, 16
      %v1211 = vrot.slane %v1209, 5
      %v1212 = vsel %vm616, %v1207, %v1211
      %1221 = vst [vmem:[#allocation3 + $0x1c] sm:$0xf] %v1114
      %1222 = vst [vmem:[#allocation3 + $0x40] sm:$0xf] %v1128
      %1223 = vst [vmem:[#allocation3 + $0x64] sm:$0xf] %v1142
      %1224 = vst [vmem:[#allocation3 + $0x88] sm:$0xf] %v1156
      %1225 = vst [vmem:[#allocation3 + $0xac] sm:$0xf] %v1170
      %1226 = vst [vmem:[#allocation3 + $0xd0] sm:$0xf] %v1184
      %1227 = vst [vmem:[#allocation3 + $0xf4] sm:$0xf] %v1198
      %1228 = vst [vmem:[#allocation3 + $0x118] sm:$0xf] %v1212
      %v1229 = vld [vmem:[%s1068] sm:$0xe]
      %v1230 = vld [vmem:[%s1068 + $0x4] sm:$0x1]
      %v1231 = vld [vmem:[%s1068 + $0x8] sm:$0xe]
      %v1232 = vld [vmem:[%s1068 + $0xc] sm:$0x1]
      %v1233 = vld [vmem:[%s1068 + $0x10] sm:$0xe]
      %v1234 = vld [vmem:[%s1068 + $0x14] sm:$0x1]
      %v1235 = vld [vmem:[%s1068 + $0x18] sm:$0xe]
      %v1236 = vld [vmem:[%s1068 + $0x1c] sm:$0x1]
      %v1237 = vld [vmem:[%s1068 + $0x20] sm:$0xe]
      %v1238 = vld [vmem:[%s1068 + $0x24] sm:$0x1]
      %v1239 = vld [vmem:[%s1068 + $0x28] sm:$0xe]
      %v1240 = vld [vmem:[%s1068 + $0x2c] sm:$0x1]
      %v1241 = vld [vmem:[%s1068 + $0x30] sm:$0xe]
      %v1242 = vld [vmem:[%s1068 + $0x34] sm:$0x1]
      %v1243 = vld [vmem:[%s1068 + $0x38] sm:$0xe]
      %v1244 = vld [vmem:[%s1068 + $0x3c] sm:$0x1]
      %v1261 = vrot.slane %v1229, 5
      %v1262 = vrot.slane %v1261, 4
      %v1263 = vrot.slane %v1230, 5
      %v1264 = vsel %vm779, %v1262, %v1263
      %v1265 = vrot.slane %v1231, 5
      %v1266 = vrot.slane %v1265, 4
      %v1267 = vrot.slane %v1232, 5
      %v1268 = vsel %vm779, %v1266, %v1267
      %v1269 = vrot.slane %v1233, 5
      %v1270 = vrot.slane %v1269, 4
      %v1271 = vrot.slane %v1234, 5
      %v1272 = vsel %vm779, %v1270, %v1271
      %v1273 = vrot.slane %v1235, 5
      %v1274 = vrot.slane %v1273, 4
      %v1275 = vrot.slane %v1236, 5
      %v1276 = vsel %vm779, %v1274, %v1275
      %v1277 = vrot.slane %v1237, 5
      %v1278 = vrot.slane %v1277, 4
      %v1279 = vrot.slane %v1238, 5
      %v1280 = vsel %vm779, %v1278, %v1279
      %v1281 = vrot.slane %v1239, 5
      %v1282 = vrot.slane %v1281, 4
      %v1283 = vrot.slane %v1240, 5
      %v1284 = vsel %vm779, %v1282, %v1283
      %v1285 = vrot.slane %v1241, 5
      %v1286 = vrot.slane %v1285, 4
      %v1287 = vrot.slane %v1242, 5
      %v1288 = vsel %vm779, %v1286, %v1287
      %v1289 = vrot.slane %v1243, 5
      %v1290 = vrot.slane %v1289, 4
      %v1291 = vrot.slane %v1244, 5
      %v1292 = vsel %vm779, %v1290, %v1291
      %1301 = vst [vmem:[#allocation3 + $0x20] sm:$0xf] %v1264
      %1302 = vst [vmem:[#allocation3 + $0x44] sm:$0xf] %v1268
      %1303 = vst [vmem:[#allocation3 + $0x68] sm:$0xf] %v1272
      %1304 = vst [vmem:[#allocation3 + $0x8c] sm:$0xf] %v1276
      %1305 = vst [vmem:[#allocation3 + $0xb0] sm:$0xf] %v1280
      %1306 = vst [vmem:[#allocation3 + $0xd4] sm:$0xf] %v1284
      %1307 = vst [vmem:[#allocation3 + $0xf8] sm:$0xf] %v1288
      %1308 = vst [vmem:[#allocation3 + $0x11c] sm:$0xf] %v1292
      %v1309 = vld [vmem:[%s3] sm:$0xf]
      %v1310 = vld [vmem:[%s3 + $0x4] sm:$0xf]
      %v1311 = vld [vmem:[%s3 + $0x8] sm:$0xf]
      %v1312 = vld [vmem:[%s3 + $0xc] sm:$0xf]
      %v1313 = vld [vmem:[%s3 + $0x10] sm:$0x3]
      %v1314 = vld [vmem:[%s4 + $0x1] sm:$0x1]
      %v1315 = vlaneseq
      %v1316 = vshrl.u32 %v1315, 7
      %v1317 = vsub.s32 0, %v1316
      %v1318 = vrot.slane %v1314, %v1317
      %v1324 = vunpack.c.l.b16 %v1309
      %v1325 = vunpack.c.l.b16 %v1310
      %v1326 = vunpack.c.l.b16 %v1311
      %v1327 = vunpack.c.l.b16 %v1312
      %v1328 = vunpack.c.l.b16 %v1313
      %v1329 = vpack.c.b16 %v1325, %v1324
      %v1330 = vpack.c.b16 %v1327, %v1326
      %v1331 = vpack.c.b16 %v1328, %v1328
      %v1335 = vsel %vm292, %v1331, 0
      %1337 = vmatprep.subr.bf16.mxu0 0
      %1338 = vmatpush1.bf16.msra.mxu0 0
      %1339 = vmatprep.subr.bf16.mxu0 0
      %1340 = vmatpush1.bf16.msra.mxu0 0
      %1341 = vmatprep.subr.bf16.mxu0 0
      %1342 = vmatpush1.bf16.msra.mxu0 0
      %1343 = vmatprep.subr.bf16.mxu0 0
      %1344 = vmatpush1.bf16.msra.mxu0 0
      %1345 = vmatprep.subr.bf16.mxu0 0
      %1346 = vmatpush1.bf16.msra.mxu0 0
      %1347 = vmatprep.subr.bf16.mxu0 0
      %1348 = vmatpush1.bf16.msra.mxu0 %v1335
      %1349 = vmatprep.subr.bf16.mxu0 0
      %1350 = vmatpush1.bf16.msra.mxu0 %v1330
      %1351 = vmatprep.subr.bf16.mxu0 0
      %1352 = vmatpush1.bf16.msra.mxu0 %v1329
      %1353 = vmatprep.subr.bf16.mxu0 0
      %1354 = vmatpush2.bf16.msra.mxu0 0
      %1355 = vmatprep.subr.bf16.mxu0 0
      %1356 = vmatpush2.bf16.msra.mxu0 0
      %1357 = vmatprep.subr.bf16.mxu0 0
      %1358 = vmatpush2.bf16.msra.mxu0 0
      %1359 = vmatprep.subr.bf16.mxu0 0
      %1360 = vmatpush2.bf16.msra.mxu0 0
      %1361 = vmatprep.subr.bf16.mxu0 0
      %1362 = vmatpush2.bf16.msra.mxu0 0
      %1363 = vmatprep.subr.bf16.mxu0 0
      %1364 = vmatpush2.bf16.msra.mxu0 0
      %1365 = vmatprep.subr.bf16.mxu0 0
      %1366 = vmatpush2.bf16.msra.mxu0 0
      %1367 = vmatprep.subr.bf16.mxu0 0
      %1368 = vmatpush2.bf16.msra.mxu0 0
      %1369 = vmatprep.mubr.bf16.mxu0 0
      %1370 = vmatmul.mubr.bf16.gmra.mxu0 %v281
      %v1371 = vpop.f32.mrf.mxu0
      %v1372 = vadd.f32 %v1318, %v1371
      %v1373 = vpop.f32.mrf.mxu0
      %v1374 = vpop.f32.mrf.mxu0
      %v1375 = vadd.f32 %v1318, %v1374
      %v1376 = vpop.f32.mrf.mxu0
      %1377 = vmatprep.mubr.bf16.mxu0 0
      %1378 = vmatmul.mubr.bf16.gmra.mxu0 %v284
      %v1379 = vpop.f32.mrf.mxu0
      %v1380 = vadd.f32 %v1318, %v1379
      %v1381 = vpop.f32.mrf.mxu0
      %v1382 = vpop.f32.mrf.mxu0
      %v1383 = vadd.f32 %v1318, %v1382
      %v1384 = vpop.f32.mrf.mxu0
      %1385 = vmatprep.mubr.bf16.mxu0 0
      %1386 = vmatmul.mubr.bf16.gmra.mxu0 %v287
      %v1387 = vpop.f32.mrf.mxu0
      %v1388 = vadd.f32 %v1318, %v1387
      %v1389 = vpop.f32.mrf.mxu0
      %v1390 = vpop.f32.mrf.mxu0
      %v1391 = vadd.f32 %v1318, %v1390
      %v1392 = vpop.f32.mrf.mxu0
      %1393 = vmatprep.mubr.bf16.mxu0 0
      %1394 = vmatmul.mubr.bf16.gmra.mxu0 %v290
      %v1395 = vpop.f32.mrf.mxu0
      %v1396 = vadd.f32 %v1318, %v1395
      %v1397 = vpop.f32.mrf.mxu0
      %v1398 = vpop.f32.mrf.mxu0
      %v1399 = vadd.f32 %v1318, %v1398
      %v1400 = vpop.f32.mrf.mxu0
      %1401 = vdwg.mxu0
      %1402 = vst [vmem:[%s224] sm:$0xff] %v1372
      %1403 = vst [vmem:[%s224 + $0x8] sm:$0xff] %v1375
      %1404 = vst [vmem:[%s224 + $0x10] sm:$0xff] %v1380
      %1405 = vst [vmem:[%s224 + $0x18] sm:$0xff] %v1383
      %1406 = vst [vmem:[%s224 + $0x20] sm:$0xff] %v1388
      %1407 = vst [vmem:[%s224 + $0x28] sm:$0xff] %v1391
      %1408 = vst [vmem:[%s224 + $0x30] sm:$0xff] %v1396
      %1409 = vst [vmem:[%s224 + $0x38] sm:$0xff] %v1399
      %v1410 = vld [vmem:[%s224] sm:$0xff]
      %v1411 = vld [vmem:[%s224 + $0x8] sm:$0xff]
      %v1412 = vld [vmem:[%s224 + $0x10] sm:$0xff]
      %v1413 = vld [vmem:[%s224 + $0x18] sm:$0xff]
      %v1414 = vld [vmem:[%s224 + $0x20] sm:$0xff]
      %v1415 = vld [vmem:[%s224 + $0x28] sm:$0xff]
      %v1416 = vld [vmem:[%s224 + $0x30] sm:$0xff]
      %v1417 = vld [vmem:[%s224 + $0x38] sm:$0xff]
      %v1418 = vld [vmem:[#allocation3] sm:$0xff]
      %v1419 = vld [vmem:[#allocation3 + $0x8] sm:$0xff]
      %v1420 = vld [vmem:[#allocation3 + $0x10] sm:$0xff]
      %v1421 = vld [vmem:[#allocation3 + $0x18] sm:$0xff]
      %v1422 = vld [vmem:[#allocation3 + $0x20] sm:$0xf]
      %v1423 = vld [vmem:[#allocation3 + $0x24] sm:$0xff]
      %v1424 = vld [vmem:[#allocation3 + $0x2c] sm:$0xff]
      %v1425 = vld [vmem:[#allocation3 + $0x34] sm:$0xff]
      %v1426 = vld [vmem:[#allocation3 + $0x3c] sm:$0xff]
      %v1427 = vld [vmem:[#allocation3 + $0x44] sm:$0xf]
      %v1428 = vld [vmem:[#allocation3 + $0x48] sm:$0xff]
      %v1429 = vld [vmem:[#allocation3 + $0x50] sm:$0xff]
      %v1430 = vld [vmem:[#allocation3 + $0x58] sm:$0xff]
      %v1431 = vld [vmem:[#allocation3 + $0x60] sm:$0xff]
      %v1432 = vld [vmem:[#allocation3 + $0x68] sm:$0xf]
      %v1433 = vld [vmem:[#allocation3 + $0x6c] sm:$0xff]
      %v1434 = vld [vmem:[#allocation3 + $0x74] sm:$0xff]
      %v1435 = vld [vmem:[#allocation3 + $0x7c] sm:$0xff]
      %v1436 = vld [vmem:[#allocation3 + $0x84] sm:$0xff]
      %v1437 = vld [vmem:[#allocation3 + $0x8c] sm:$0xf]
      %v1438 = vld [vmem:[#allocation3 + $0x90] sm:$0xff]
      %v1439 = vld [vmem:[#allocation3 + $0x98] sm:$0xff]
      %v1440 = vld [vmem:[#allocation3 + $0xa0] sm:$0xff]
      %v1441 = vld [vmem:[#allocation3 + $0xa8] sm:$0xff]
      %v1442 = vld [vmem:[#allocation3 + $0xb0] sm:$0xf]
      %v1443 = vld [vmem:[#allocation3 + $0xb4] sm:$0xff]
      %v1444 = vld [vmem:[#allocation3 + $0xbc] sm:$0xff]
      %v1445 = vld [vmem:[#allocation3 + $0xc4] sm:$0xff]
      %v1446 = vld [vmem:[#allocation3 + $0xcc] sm:$0xff]
      %v1447 = vld [vmem:[#allocation3 + $0xd4] sm:$0xf]
      %v1448 = vld [vmem:[#allocation3 + $0xd8] sm:$0xff]
      %v1449 = vld [vmem:[#allocation3 + $0xe0] sm:$0xff]
      %v1450 = vld [vmem:[#allocation3 + $0xe8] sm:$0xff]
      %v1451 = vld [vmem:[#allocation3 + $0xf0] sm:$0xff]
      %v1452 = vld [vmem:[#allocation3 + $0xf8] sm:$0xf]
      %v1453 = vld [vmem:[#allocation3 + $0xfc] sm:$0xff]
      %v1454 = vld [vmem:[#allocation3 + $0x104] sm:$0xff]
      %v1455 = vld [vmem:[#allocation3 + $0x10c] sm:$0xff]
      %v1456 = vld [vmem:[#allocation3 + $0x114] sm:$0xff]
      %v1457 = vld [vmem:[#allocation3 + $0x11c] sm:$0xf]
      %v1458 = vld [vmem:[%s2] sm:$0xf]
      %v1459 = vld [vmem:[%s2 + $0x4] sm:$0xf]
      %v1460 = vld [vmem:[%s2 + $0x8] sm:$0xf]
      %v1461 = vld [vmem:[%s2 + $0xc] sm:$0xf]
      %v1462 = vld [vmem:[%s2 + $0x10] sm:$0xf]
      %v1463 = vld [vmem:[%s2 + $0x14] sm:$0xf]
      %v1464 = vld [vmem:[%s2 + $0x18] sm:$0xf]
      %v1465 = vld [vmem:[%s2 + $0x1c] sm:$0xf]
      %v1466 = vld [vmem:[%s2 + $0x20] sm:$0xf]
      %v1467 = vld [vmem:[%s2 + $0x24] sm:$0xf]
      %v1468 = vld [vmem:[%s2 + $0x28] sm:$0xf]
      %v1469 = vld [vmem:[%s2 + $0x2c] sm:$0xf]
      %v1470 = vld [vmem:[%s2 + $0x30] sm:$0xf]
      %v1471 = vld [vmem:[%s2 + $0x34] sm:$0xf]
      %v1472 = vld [vmem:[%s2 + $0x38] sm:$0xf]
      %v1473 = vld [vmem:[%s2 + $0x3c] sm:$0xf]
      %v1474 = vld [vmem:[%s2 + $0x40] sm:$0xf]
      %v1475 = vld [vmem:[%s2 + $0x44] sm:$0xf]
      %v1476 = vld [vmem:[%s2 + $0x48] sm:$0xf]
      %v1477 = vld [vmem:[%s2 + $0x4c] sm:$0xf]
      %v1478 = vld [vmem:[%s2 + $0x50] sm:$0xf]
      %v1479 = vld [vmem:[%s2 + $0x54] sm:$0xf]
      %v1480 = vld [vmem:[%s2 + $0x58] sm:$0xf]
      %v1481 = vld [vmem:[%s2 + $0x5c] sm:$0xf]
      %v1482 = vld [vmem:[%s2 + $0x60] sm:$0xf]
      %v1483 = vld [vmem:[%s2 + $0x64] sm:$0xf]
      %v1484 = vld [vmem:[%s2 + $0x68] sm:$0xf]
      %v1485 = vld [vmem:[%s2 + $0x6c] sm:$0xf]
      %v1486 = vld [vmem:[%s2 + $0x70] sm:$0xf]
      %v1487 = vld [vmem:[%s2 + $0x74] sm:$0xf]
      %v1488 = vld [vmem:[%s2 + $0x78] sm:$0xf]
      %v1489 = vld [vmem:[%s2 + $0x7c] sm:$0xf]
      %v1490 = vld [vmem:[%s2 + $0x80] sm:$0xf]
      %v1491 = vld [vmem:[%s2 + $0x84] sm:$0xf]
      %v1492 = vld [vmem:[%s2 + $0x88] sm:$0xf]
      %v1493 = vld [vmem:[%s2 + $0x8c] sm:$0xf]
      %v1494 = vld [vmem:[%s2 + $0x90] sm:$0xf]
      %v1495 = vld [vmem:[%s2 + $0x94] sm:$0xf]
      %v1496 = vld [vmem:[%s2 + $0x98] sm:$0xf]
      %v1497 = vld [vmem:[%s2 + $0x9c] sm:$0xf]
      %v1498 = vld [vmem:[%s2 + $0xa0] sm:$0xf]
      %v1499 = vld [vmem:[%s2 + $0xa4] sm:$0xf]
      %v1500 = vld [vmem:[%s2 + $0xa8] sm:$0xf]
      %v1501 = vld [vmem:[%s2 + $0xac] sm:$0xf]
      %v1502 = vld [vmem:[%s2 + $0xb0] sm:$0xf]
      %v1503 = vld [vmem:[%s2 + $0xb4] sm:$0xf]
      %v1504 = vld [vmem:[%s2 + $0xb8] sm:$0xf]
      %v1505 = vld [vmem:[%s2 + $0xbc] sm:$0xf]
      %v1506 = vld [vmem:[%s2 + $0xc0] sm:$0xf]
      %v1507 = vld [vmem:[%s2 + $0xc4] sm:$0xf]
      %v1508 = vld [vmem:[%s2 + $0xc8] sm:$0xf]
      %v1509 = vld [vmem:[%s2 + $0xcc] sm:$0xf]
      %v1510 = vld [vmem:[%s2 + $0xd0] sm:$0xf]
      %v1511 = vld [vmem:[%s2 + $0xd4] sm:$0xf]
      %v1512 = vld [vmem:[%s2 + $0xd8] sm:$0xf]
      %v1513 = vld [vmem:[%s2 + $0xdc] sm:$0xf]
      %v1514 = vld [vmem:[%s2 + $0xe0] sm:$0xf]
      %v1515 = vld [vmem:[%s2 + $0xe4] sm:$0xf]
      %v1516 = vld [vmem:[%s2 + $0xe8] sm:$0xf]
      %v1517 = vld [vmem:[%s2 + $0xec] sm:$0xf]
      %v1518 = vld [vmem:[%s2 + $0xf0] sm:$0xf]
      %v1519 = vld [vmem:[%s2 + $0xf4] sm:$0xf]
      %v1520 = vld [vmem:[%s2 + $0xf8] sm:$0xf]
      %v1521 = vld [vmem:[%s2 + $0xfc] sm:$0xf]
      %v1522 = vld [vmem:[%s2 + $0x100] sm:$0xf]
      %v1523 = vld [vmem:[%s2 + $0x104] sm:$0xf]
      %v1524 = vld [vmem:[%s2 + $0x108] sm:$0xf]
      %v1525 = vld [vmem:[%s2 + $0x10c] sm:$0xf]
      %v1526 = vld [vmem:[%s2 + $0x110] sm:$0xf]
      %v1527 = vld [vmem:[%s2 + $0x114] sm:$0xf]
      %v1528 = vld [vmem:[%s2 + $0x118] sm:$0xf]
      %v1529 = vld [vmem:[%s2 + $0x11c] sm:$0xf]
      %v1530 = vld [vmem:[%s2 + $0x120] sm:$0xf]
      %v1531 = vld [vmem:[%s2 + $0x124] sm:$0xf]
      %v1532 = vld [vmem:[%s2 + $0x128] sm:$0xf]
      %v1533 = vld [vmem:[%s2 + $0x12c] sm:$0xf]
      %v1534 = vld [vmem:[%s2 + $0x130] sm:$0xf]
      %v1535 = vld [vmem:[%s2 + $0x134] sm:$0xf]
      %v1536 = vld [vmem:[%s2 + $0x138] sm:$0xf]
      %v1537 = vld [vmem:[%s2 + $0x13c] sm:$0xf]
      %v1538 = vld [vmem:[%s2 + $0x140] sm:$0xf]
      %v1539 = vld [vmem:[%s2 + $0x144] sm:$0xf]
      %v1540 = vld [vmem:[%s2 + $0x148] sm:$0xf]
      %v1541 = vld [vmem:[%s2 + $0x14c] sm:$0xf]
      %v1542 = vld [vmem:[%s2 + $0x150] sm:$0xf]
      %v1543 = vld [vmem:[%s2 + $0x154] sm:$0xf]
      %v1544 = vld [vmem:[%s2 + $0x158] sm:$0xf]
      %v1545 = vld [vmem:[%s2 + $0x15c] sm:$0xf]
      %v1546 = vld [vmem:[%s2 + $0x160] sm:$0xf]
      %v1547 = vld [vmem:[%s2 + $0x164] sm:$0xf]
      %v1548 = vld [vmem:[%s2 + $0x168] sm:$0xf]
      %v1549 = vld [vmem:[%s2 + $0x16c] sm:$0xf]
      %v1550 = vld [vmem:[%s2 + $0x170] sm:$0xf]
      %v1551 = vld [vmem:[%s2 + $0x174] sm:$0xf]
      %v1552 = vld [vmem:[%s2 + $0x178] sm:$0xf]
      %v1553 = vld [vmem:[%s2 + $0x17c] sm:$0xf]
      %v1554 = vld [vmem:[%s2 + $0x180] sm:$0xf]
      %v1555 = vld [vmem:[%s2 + $0x184] sm:$0xf]
      %v1556 = vld [vmem:[%s2 + $0x188] sm:$0xf]
      %v1557 = vld [vmem:[%s2 + $0x18c] sm:$0xf]
      %v1558 = vld [vmem:[%s2 + $0x190] sm:$0xf]
      %v1559 = vld [vmem:[%s2 + $0x194] sm:$0xf]
      %v1560 = vld [vmem:[%s2 + $0x198] sm:$0xf]
      %v1561 = vld [vmem:[%s2 + $0x19c] sm:$0xf]
      %v1562 = vld [vmem:[%s2 + $0x1a0] sm:$0xf]
      %v1563 = vld [vmem:[%s2 + $0x1a4] sm:$0xf]
      %v1564 = vld [vmem:[%s2 + $0x1a8] sm:$0xf]
      %v1565 = vld [vmem:[%s2 + $0x1ac] sm:$0xf]
      %v1566 = vld [vmem:[%s2 + $0x1b0] sm:$0xf]
      %v1567 = vld [vmem:[%s2 + $0x1b4] sm:$0xf]
      %v1568 = vld [vmem:[%s2 + $0x1b8] sm:$0xf]
      %v1569 = vld [vmem:[%s2 + $0x1bc] sm:$0xf]
      %v1570 = vld [vmem:[%s2 + $0x1c0] sm:$0xf]
      %v1571 = vld [vmem:[%s2 + $0x1c4] sm:$0xf]
      %v1572 = vld [vmem:[%s2 + $0x1c8] sm:$0xf]
      %v1573 = vld [vmem:[%s2 + $0x1cc] sm:$0xf]
      %v1574 = vld [vmem:[%s2 + $0x1d0] sm:$0xf]
      %v1575 = vld [vmem:[%s2 + $0x1d4] sm:$0xf]
      %v1576 = vld [vmem:[%s2 + $0x1d8] sm:$0xf]
      %v1577 = vld [vmem:[%s2 + $0x1dc] sm:$0xf]
      %v1578 = vld [vmem:[%s2 + $0x1e0] sm:$0xf]
      %v1579 = vld [vmem:[%s2 + $0x1e4] sm:$0xf]
      %v1580 = vld [vmem:[%s2 + $0x1e8] sm:$0xf]
      %v1581 = vld [vmem:[%s2 + $0x1ec] sm:$0xf]
      %v1582 = vld [vmem:[%s2 + $0x1f0] sm:$0xf]
      %v1583 = vld [vmem:[%s2 + $0x1f4] sm:$0xf]
      %v1584 = vld [vmem:[%s2 + $0x1f8] sm:$0xf]
      %v1585 = vld [vmem:[%s2 + $0x1fc] sm:$0xf]
      %v1586 = vld [vmem:[%s2 + $0x200] sm:$0xf]
      %v1587 = vld [vmem:[%s2 + $0x204] sm:$0xf]
      %v1588 = vld [vmem:[%s2 + $0x208] sm:$0xf]
      %v1589 = vld [vmem:[%s2 + $0x20c] sm:$0xf]
      %v1590 = vld [vmem:[%s2 + $0x210] sm:$0xf]
      %v1591 = vld [vmem:[%s2 + $0x214] sm:$0xf]
      %v1592 = vld [vmem:[%s2 + $0x218] sm:$0xf]
      %v1593 = vld [vmem:[%s2 + $0x21c] sm:$0xf]
      %v1594 = vld [vmem:[%s2 + $0x220] sm:$0xf]
      %v1595 = vld [vmem:[%s2 + $0x224] sm:$0xf]
      %v1596 = vld [vmem:[%s2 + $0x228] sm:$0xf]
      %v1597 = vld [vmem:[%s2 + $0x22c] sm:$0xf]
      %v1598 = vld [vmem:[%s2 + $0x230] sm:$0xf]
      %v1599 = vld [vmem:[%s2 + $0x234] sm:$0xf]
      %v1600 = vld [vmem:[%s2 + $0x238] sm:$0xf]
      %v1601 = vld [vmem:[%s2 + $0x23c] sm:$0xf]
      %v1642 = vunpack.c.l.b16 %v1418
      %v1643 = vunpack.c.h.b16 %v1418
      %v1644 = vunpack.c.l.b16 %v1419
      %v1645 = vunpack.c.h.b16 %v1419
      %v1646 = vunpack.c.l.b16 %v1420
      %v1647 = vunpack.c.h.b16 %v1420
      %v1648 = vunpack.c.l.b16 %v1421
      %v1649 = vunpack.c.h.b16 %v1421
      %v1650 = vunpack.c.l.b16 %v1422
      %v1651 = vunpack.c.l.b16 %v1423
      %v1652 = vunpack.c.h.b16 %v1423
      %v1653 = vunpack.c.l.b16 %v1424
      %v1654 = vunpack.c.h.b16 %v1424
      %v1655 = vunpack.c.l.b16 %v1425
      %v1656 = vunpack.c.h.b16 %v1425
      %v1657 = vunpack.c.l.b16 %v1426
      %v1658 = vunpack.c.h.b16 %v1426
      %v1659 = vunpack.c.l.b16 %v1427
      %v1660 = vunpack.c.l.b16 %v1428
      %v1661 = vunpack.c.h.b16 %v1428
      %v1662 = vunpack.c.l.b16 %v1429
      %v1663 = vunpack.c.h.b16 %v1429
      %v1664 = vunpack.c.l.b16 %v1430
      %v1665 = vunpack.c.h.b16 %v1430
      %v1666 = vunpack.c.l.b16 %v1431
      %v1667 = vunpack.c.h.b16 %v1431
      %v1668 = vunpack.c.l.b16 %v1432
      %v1669 = vunpack.c.l.b16 %v1433
      %v1670 = vunpack.c.h.b16 %v1433
      %v1671 = vunpack.c.l.b16 %v1434
      %v1672 = vunpack.c.h.b16 %v1434
      %v1673 = vunpack.c.l.b16 %v1435
      %v1674 = vunpack.c.h.b16 %v1435
      %v1675 = vunpack.c.l.b16 %v1436
      %v1676 = vunpack.c.h.b16 %v1436
      %v1677 = vunpack.c.l.b16 %v1437
      %v1678 = vunpack.c.l.b16 %v1438
      %v1679 = vunpack.c.h.b16 %v1438
      %v1680 = vunpack.c.l.b16 %v1439
      %v1681 = vunpack.c.h.b16 %v1439
      %v1682 = vunpack.c.l.b16 %v1440
      %v1683 = vunpack.c.h.b16 %v1440
      %v1684 = vunpack.c.l.b16 %v1441
      %v1685 = vunpack.c.h.b16 %v1441
      %v1686 = vunpack.c.l.b16 %v1442
      %v1687 = vunpack.c.l.b16 %v1443
      %v1688 = vunpack.c.h.b16 %v1443
      %v1689 = vunpack.c.l.b16 %v1444
      %v1690 = vunpack.c.h.b16 %v1444
      %v1691 = vunpack.c.l.b16 %v1445
      %v1692 = vunpack.c.h.b16 %v1445
      %v1693 = vunpack.c.l.b16 %v1446
      %v1694 = vunpack.c.h.b16 %v1446
      %v1695 = vunpack.c.l.b16 %v1447
      %v1696 = vunpack.c.l.b16 %v1448
      %v1697 = vunpack.c.h.b16 %v1448
      %v1698 = vunpack.c.l.b16 %v1449
      %v1699 = vunpack.c.h.b16 %v1449
      %v1700 = vunpack.c.l.b16 %v1450
      %v1701 = vunpack.c.h.b16 %v1450
      %v1702 = vunpack.c.l.b16 %v1451
      %v1703 = vunpack.c.h.b16 %v1451
      %v1704 = vunpack.c.l.b16 %v1452
      %v1705 = vunpack.c.l.b16 %v1453
      %v1706 = vunpack.c.h.b16 %v1453
      %v1707 = vunpack.c.l.b16 %v1454
      %v1708 = vunpack.c.h.b16 %v1454
      %v1709 = vunpack.c.l.b16 %v1455
      %v1710 = vunpack.c.h.b16 %v1455
      %v1711 = vunpack.c.l.b16 %v1456
      %v1712 = vunpack.c.h.b16 %v1456
      %v1713 = vunpack.c.l.b16 %v1457
      %v1714 = vpack.c.b16 %v1651, %v1642
      %v1715 = vpack.c.b16 %v1652, %v1643
      %v1716 = vpack.c.b16 %v1653, %v1644
      %v1717 = vpack.c.b16 %v1654, %v1645
      %v1718 = vpack.c.b16 %v1655, %v1646
      %v1719 = vpack.c.b16 %v1656, %v1647
      %v1720 = vpack.c.b16 %v1657, %v1648
      %v1721 = vpack.c.b16 %v1658, %v1649
      %v1722 = vpack.c.b16 %v1659, %v1650
      %v1723 = vpack.c.b16 %v1669, %v1660
      %v1724 = vpack.c.b16 %v1670, %v1661
      %v1725 = vpack.c.b16 %v1671, %v1662
      %v1726 = vpack.c.b16 %v1672, %v1663
      %v1727 = vpack.c.b16 %v1673, %v1664
      %v1728 = vpack.c.b16 %v1674, %v1665
      %v1729 = vpack.c.b16 %v1675, %v1666
      %v1730 = vpack.c.b16 %v1676, %v1667
      %v1731 = vpack.c.b16 %v1677, %v1668
      %v1732 = vpack.c.b16 %v1687, %v1678
      %v1733 = vpack.c.b16 %v1688, %v1679
      %v1734 = vpack.c.b16 %v1689, %v1680
      %v1735 = vpack.c.b16 %v1690, %v1681
      %v1736 = vpack.c.b16 %v1691, %v1682
      %v1737 = vpack.c.b16 %v1692, %v1683
      %v1738 = vpack.c.b16 %v1693, %v1684
      %v1739 = vpack.c.b16 %v1694, %v1685
      %v1740 = vpack.c.b16 %v1695, %v1686
      %v1741 = vpack.c.b16 %v1705, %v1696
      %v1742 = vpack.c.b16 %v1706, %v1697
      %v1743 = vpack.c.b16 %v1707, %v1698
      %v1744 = vpack.c.b16 %v1708, %v1699
      %v1745 = vpack.c.b16 %v1709, %v1700
      %v1746 = vpack.c.b16 %v1710, %v1701
      %v1747 = vpack.c.b16 %v1711, %v1702
      %v1748 = vpack.c.b16 %v1712, %v1703
      %v1749 = vpack.c.b16 %v1713, %v1704
      %v1930 = vunpack.c.l.b16 %v1458
      %v1931 = vunpack.c.l.b16 %v1459
      %v1932 = vunpack.c.l.b16 %v1460
      %v1933 = vunpack.c.l.b16 %v1461
      %v1934 = vunpack.c.l.b16 %v1462
      %v1935 = vunpack.c.l.b16 %v1463
      %v1936 = vunpack.c.l.b16 %v1464
      %v1937 = vunpack.c.l.b16 %v1465
      %v1938 = vunpack.c.l.b16 %v1466
      %v1939 = vunpack.c.l.b16 %v1467
      %v1940 = vunpack.c.l.b16 %v1468
      %v1941 = vunpack.c.l.b16 %v1469
      %v1942 = vunpack.c.l.b16 %v1470
      %v1943 = vunpack.c.l.b16 %v1471
      %v1944 = vunpack.c.l.b16 %v1472
      %v1945 = vunpack.c.l.b16 %v1473
      %v1946 = vunpack.c.l.b16 %v1474
      %v1947 = vunpack.c.l.b16 %v1475
      %v1948 = vunpack.c.l.b16 %v1476
      %v1949 = vunpack.c.l.b16 %v1477
      %v1950 = vunpack.c.l.b16 %v1478
      %v1951 = vunpack.c.l.b16 %v1479
      %v1952 = vunpack.c.l.b16 %v1480
      %v1953 = vunpack.c.l.b16 %v1481
      %v1954 = vunpack.c.l.b16 %v1482
      %v1955 = vunpack.c.l.b16 %v1483
      %v1956 = vunpack.c.l.b16 %v1484
      %v1957 = vunpack.c.l.b16 %v1485
      %v1958 = vunpack.c.l.b16 %v1486
      %v1959 = vunpack.c.l.b16 %v1487
      %v1960 = vunpack.c.l.b16 %v1488
      %v1961 = vunpack.c.l.b16 %v1489
      %v1962 = vunpack.c.l.b16 %v1490
      %v1963 = vunpack.c.l.b16 %v1491
      %v1964 = vunpack.c.l.b16 %v1492
      %v1965 = vunpack.c.l.b16 %v1493
      %v1966 = vunpack.c.l.b16 %v1494
      %v1967 = vunpack.c.l.b16 %v1495
      %v1968 = vunpack.c.l.b16 %v1496
      %v1969 = vunpack.c.l.b16 %v1497
      %v1970 = vunpack.c.l.b16 %v1498
      %v1971 = vunpack.c.l.b16 %v1499
      %v1972 = vunpack.c.l.b16 %v1500
      %v1973 = vunpack.c.l.b16 %v1501
      %v1974 = vunpack.c.l.b16 %v1502
      %v1975 = vunpack.c.l.b16 %v1503
      %v1976 = vunpack.c.l.b16 %v1504
      %v1977 = vunpack.c.l.b16 %v1505
      %v1978 = vunpack.c.l.b16 %v1506
      %v1979 = vunpack.c.l.b16 %v1507
      %v1980 = vunpack.c.l.b16 %v1508
      %v1981 = vunpack.c.l.b16 %v1509
      %v1982 = vunpack.c.l.b16 %v1510
      %v1983 = vunpack.c.l.b16 %v1511
      %v1984 = vunpack.c.l.b16 %v1512
      %v1985 = vunpack.c.l.b16 %v1513
      %v1986 = vunpack.c.l.b16 %v1514
      %v1987 = vunpack.c.l.b16 %v1515
      %v1988 = vunpack.c.l.b16 %v1516
      %v1989 = vunpack.c.l.b16 %v1517
      %v1990 = vunpack.c.l.b16 %v1518
      %v1991 = vunpack.c.l.b16 %v1519
      %v1992 = vunpack.c.l.b16 %v1520
      %v1993 = vunpack.c.l.b16 %v1521
      %v1994 = vunpack.c.l.b16 %v1522
      %v1995 = vunpack.c.l.b16 %v1523
      %v1996 = vunpack.c.l.b16 %v1524
      %v1997 = vunpack.c.l.b16 %v1525
      %v1998 = vunpack.c.l.b16 %v1526
      %v1999 = vunpack.c.l.b16 %v1527
      %v2000 = vunpack.c.l.b16 %v1528
      %v2001 = vunpack.c.l.b16 %v1529
      %v2002 = vunpack.c.l.b16 %v1530
      %v2003 = vunpack.c.l.b16 %v1531
      %v2004 = vunpack.c.l.b16 %v1532
      %v2005 = vunpack.c.l.b16 %v1533
      %v2006 = vunpack.c.l.b16 %v1534
      %v2007 = vunpack.c.l.b16 %v1535
      %v2008 = vunpack.c.l.b16 %v1536
      %v2009 = vunpack.c.l.b16 %v1537
      %v2010 = vunpack.c.l.b16 %v1538
      %v2011 = vunpack.c.l.b16 %v1539
      %v2012 = vunpack.c.l.b16 %v1540
      %v2013 = vunpack.c.l.b16 %v1541
      %v2014 = vunpack.c.l.b16 %v1542
      %v2015 = vunpack.c.l.b16 %v1543
      %v2016 = vunpack.c.l.b16 %v1544
      %v2017 = vunpack.c.l.b16 %v1545
      %v2018 = vunpack.c.l.b16 %v1546
      %v2019 = vunpack.c.l.b16 %v1547
      %v2020 = vunpack.c.l.b16 %v1548
      %v2021 = vunpack.c.l.b16 %v1549
      %v2022 = vunpack.c.l.b16 %v1550
      %v2023 = vunpack.c.l.b16 %v1551
      %v2024 = vunpack.c.l.b16 %v1552
      %v2025 = vunpack.c.l.b16 %v1553
      %v2026 = vunpack.c.l.b16 %v1554
      %v2027 = vunpack.c.l.b16 %v1555
      %v2028 = vunpack.c.l.b16 %v1556
      %v2029 = vunpack.c.l.b16 %v1557
      %v2030 = vunpack.c.l.b16 %v1558
      %v2031 = vunpack.c.l.b16 %v1559
      %v2032 = vunpack.c.l.b16 %v1560
      %v2033 = vunpack.c.l.b16 %v1561
      %v2034 = vunpack.c.l.b16 %v1562
      %v2035 = vunpack.c.l.b16 %v1563
      %v2036 = vunpack.c.l.b16 %v1564
      %v2037 = vunpack.c.l.b16 %v1565
      %v2038 = vunpack.c.l.b16 %v1566
      %v2039 = vunpack.c.l.b16 %v1567
      %v2040 = vunpack.c.l.b16 %v1568
      %v2041 = vunpack.c.l.b16 %v1569
      %v2042 = vunpack.c.l.b16 %v1570
      %v2043 = vunpack.c.l.b16 %v1571
      %v2044 = vunpack.c.l.b16 %v1572
      %v2045 = vunpack.c.l.b16 %v1573
      %v2046 = vunpack.c.l.b16 %v1574
      %v2047 = vunpack.c.l.b16 %v1575
      %v2048 = vunpack.c.l.b16 %v1576
      %v2049 = vunpack.c.l.b16 %v1577
      %v2050 = vunpack.c.l.b16 %v1578
      %v2051 = vunpack.c.l.b16 %v1579
      %v2052 = vunpack.c.l.b16 %v1580
      %v2053 = vunpack.c.l.b16 %v1581
      %v2054 = vunpack.c.l.b16 %v1582
      %v2055 = vunpack.c.l.b16 %v1583
      %v2056 = vunpack.c.l.b16 %v1584
      %v2057 = vunpack.c.l.b16 %v1585
      %v2058 = vunpack.c.l.b16 %v1586
      %v2059 = vunpack.c.l.b16 %v1587
      %v2060 = vunpack.c.l.b16 %v1588
      %v2061 = vunpack.c.l.b16 %v1589
      %v2062 = vunpack.c.l.b16 %v1590
      %v2063 = vunpack.c.l.b16 %v1591
      %v2064 = vunpack.c.l.b16 %v1592
      %v2065 = vunpack.c.l.b16 %v1593
      %v2066 = vunpack.c.l.b16 %v1594
      %v2067 = vunpack.c.l.b16 %v1595
      %v2068 = vunpack.c.l.b16 %v1596
      %v2069 = vunpack.c.l.b16 %v1597
      %v2070 = vunpack.c.l.b16 %v1598
      %v2071 = vunpack.c.l.b16 %v1599
      %v2072 = vunpack.c.l.b16 %v1600
      %v2073 = vunpack.c.l.b16 %v1601
      %v2074 = vpack.c.b16 %v1931, %v1930
      %v2075 = vpack.c.b16 %v1933, %v1932
      %v2076 = vpack.c.b16 %v1935, %v1934
      %v2077 = vpack.c.b16 %v1937, %v1936
      %v2078 = vpack.c.b16 %v1939, %v1938
      %v2079 = vpack.c.b16 %v1941, %v1940
      %v2080 = vpack.c.b16 %v1943, %v1942
      %v2081 = vpack.c.b16 %v1945, %v1944
      %v2082 = vpack.c.b16 %v1947, %v1946
      %v2083 = vpack.c.b16 %v1949, %v1948
      %v2084 = vpack.c.b16 %v1951, %v1950
      %v2085 = vpack.c.b16 %v1953, %v1952
      %v2086 = vpack.c.b16 %v1955, %v1954
      %v2087 = vpack.c.b16 %v1957, %v1956
      %v2088 = vpack.c.b16 %v1959, %v1958
      %v2089 = vpack.c.b16 %v1961, %v1960
      %v2090 = vpack.c.b16 %v1963, %v1962
      %v2091 = vpack.c.b16 %v1965, %v1964
      %v2092 = vpack.c.b16 %v1967, %v1966
      %v2093 = vpack.c.b16 %v1969, %v1968
      %v2094 = vpack.c.b16 %v1971, %v1970
      %v2095 = vpack.c.b16 %v1973, %v1972
      %v2096 = vpack.c.b16 %v1975, %v1974
      %v2097 = vpack.c.b16 %v1977, %v1976
      %v2098 = vpack.c.b16 %v1979, %v1978
      %v2099 = vpack.c.b16 %v1981, %v1980
      %v2100 = vpack.c.b16 %v1983, %v1982
      %v2101 = vpack.c.b16 %v1985, %v1984
      %v2102 = vpack.c.b16 %v1987, %v1986
      %v2103 = vpack.c.b16 %v1989, %v1988
      %v2104 = vpack.c.b16 %v1991, %v1990
      %v2105 = vpack.c.b16 %v1993, %v1992
      %v2106 = vpack.c.b16 %v1995, %v1994
      %v2107 = vpack.c.b16 %v1997, %v1996
      %v2108 = vpack.c.b16 %v1999, %v1998
      %v2109 = vpack.c.b16 %v2001, %v2000
      %v2110 = vpack.c.b16 %v2003, %v2002
      %v2111 = vpack.c.b16 %v2005, %v2004
      %v2112 = vpack.c.b16 %v2007, %v2006
      %v2113 = vpack.c.b16 %v2009, %v2008
      %v2114 = vpack.c.b16 %v2011, %v2010
      %v2115 = vpack.c.b16 %v2013, %v2012
      %v2116 = vpack.c.b16 %v2015, %v2014
      %v2117 = vpack.c.b16 %v2017, %v2016
      %v2118 = vpack.c.b16 %v2019, %v2018
      %v2119 = vpack.c.b16 %v2021, %v2020
      %v2120 = vpack.c.b16 %v2023, %v2022
      %v2121 = vpack.c.b16 %v2025, %v2024
      %v2122 = vpack.c.b16 %v2027, %v2026
      %v2123 = vpack.c.b16 %v2029, %v2028
      %v2124 = vpack.c.b16 %v2031, %v2030
      %v2125 = vpack.c.b16 %v2033, %v2032
      %v2126 = vpack.c.b16 %v2035, %v2034
      %v2127 = vpack.c.b16 %v2037, %v2036
      %v2128 = vpack.c.b16 %v2039, %v2038
      %v2129 = vpack.c.b16 %v2041, %v2040
      %v2130 = vpack.c.b16 %v2043, %v2042
      %v2131 = vpack.c.b16 %v2045, %v2044
      %v2132 = vpack.c.b16 %v2047, %v2046
      %v2133 = vpack.c.b16 %v2049, %v2048
      %v2134 = vpack.c.b16 %v2051, %v2050
      %v2135 = vpack.c.b16 %v2053, %v2052
      %v2136 = vpack.c.b16 %v2055, %v2054
      %v2137 = vpack.c.b16 %v2057, %v2056
      %v2138 = vpack.c.b16 %v2059, %v2058
      %v2139 = vpack.c.b16 %v2061, %v2060
      %v2140 = vpack.c.b16 %v2063, %v2062
      %v2141 = vpack.c.b16 %v2065, %v2064
      %v2142 = vpack.c.b16 %v2067, %v2066
      %v2143 = vpack.c.b16 %v2069, %v2068
      %v2144 = vpack.c.b16 %v2071, %v2070
      %v2145 = vpack.c.b16 %v2073, %v2072
      %2218 = vmatprep.subr.bf16.mxu0 0
      %2219 = vmatpush1.bf16.msra.mxu0 %v2081
      %2220 = vmatprep.subr.bf16.mxu0 0
      %2221 = vmatpush1.bf16.msra.mxu0 %v2080
      %2222 = vmatprep.subr.bf16.mxu0 0
      %2223 = vmatpush1.bf16.msra.mxu0 %v2079
      %2224 = vmatprep.subr.bf16.mxu0 0
      %2225 = vmatpush1.bf16.msra.mxu0 %v2078
      %2226 = vmatprep.subr.bf16.mxu0 0
      %2227 = vmatpush1.bf16.msra.mxu0 %v2077
      %2228 = vmatprep.subr.bf16.mxu0 0
      %2229 = vmatpush1.bf16.msra.mxu0 %v2076
      %2230 = vmatprep.subr.bf16.mxu0 0
      %2231 = vmatpush1.bf16.msra.mxu0 %v2075
      %2232 = vmatprep.subr.bf16.mxu0 0
      %2233 = vmatpush1.bf16.msra.mxu0 %v2074
      %2234 = vmatprep.subr.bf16.mxu0 0
      %2235 = vmatpush2.bf16.msra.mxu0 %v2089
      %2236 = vmatprep.subr.bf16.mxu0 0
      %2237 = vmatpush2.bf16.msra.mxu0 %v2088
      %2238 = vmatprep.subr.bf16.mxu0 0
      %2239 = vmatpush2.bf16.msra.mxu0 %v2087
      %2240 = vmatprep.subr.bf16.mxu0 0
      %2241 = vmatpush2.bf16.msra.mxu0 %v2086
      %2242 = vmatprep.subr.bf16.mxu0 0
      %2243 = vmatpush2.bf16.msra.mxu0 %v2085
      %2244 = vmatprep.subr.bf16.mxu0 0
      %2245 = vmatpush2.bf16.msra.mxu0 %v2084
      %2246 = vmatprep.subr.bf16.mxu0 0
      %2247 = vmatpush2.bf16.msra.mxu0 %v2083
      %2248 = vmatprep.subr.bf16.mxu0 0
      %2249 = vmatpush2.bf16.msra.mxu0 %v2082
      %2250 = vmatprep.mubr.bf16.mxu0 %v1715
      %2251 = vmatmul.mubr.bf16.gmra.mxu0 %v1714
      %v2252 = vpop.f32.mrf.mxu0
      %v2253 = vadd.f32 0.0, %v2252
      %v2254 = vpop.f32.mrf.mxu0
      %v2255 = vpop.f32.mrf.mxu0
      %v2256 = vadd.f32 0.0, %v2255
      %v2257 = vpop.f32.mrf.mxu0
      %2258 = vmatprep.mubr.bf16.mxu0 %v1724
      %2259 = vmatmul.mubr.bf16.gmra.mxu0 %v1723
      %v2260 = vpop.f32.mrf.mxu0
      %v2261 = vadd.f32 0.0, %v2260
      %v2262 = vpop.f32.mrf.mxu0
      %v2263 = vpop.f32.mrf.mxu0
      %v2264 = vadd.f32 0.0, %v2263
      %v2265 = vpop.f32.mrf.mxu0
      %2266 = vmatprep.mubr.bf16.mxu0 %v1733
      %2267 = vmatmul.mubr.bf16.gmra.mxu0 %v1732
      %v2268 = vpop.f32.mrf.mxu0
      %v2269 = vadd.f32 0.0, %v2268
      %v2270 = vpop.f32.mrf.mxu0
      %v2271 = vpop.f32.mrf.mxu0
      %v2272 = vadd.f32 0.0, %v2271
      %v2273 = vpop.f32.mrf.mxu0
      %2274 = vmatprep.mubr.bf16.mxu0 %v1742
      %2275 = vmatmul.mubr.bf16.gmra.mxu0 %v1741
      %v2276 = vpop.f32.mrf.mxu0
      %v2277 = vadd.f32 0.0, %v2276
      %v2278 = vpop.f32.mrf.mxu0
      %v2279 = vpop.f32.mrf.mxu0
      %v2280 = vadd.f32 0.0, %v2279
      %v2281 = vpop.f32.mrf.mxu0
      %2282 = vdwg.mxu0
      %2283 = vmatprep.subr.bf16.mxu0 0
      %2284 = vmatpush1.bf16.msra.mxu0 %v2097
      %2285 = vmatprep.subr.bf16.mxu0 0
      %2286 = vmatpush1.bf16.msra.mxu0 %v2096
      %2287 = vmatprep.subr.bf16.mxu0 0
      %2288 = vmatpush1.bf16.msra.mxu0 %v2095
      %2289 = vmatprep.subr.bf16.mxu0 0
      %2290 = vmatpush1.bf16.msra.mxu0 %v2094
      %2291 = vmatprep.subr.bf16.mxu0 0
      %2292 = vmatpush1.bf16.msra.mxu0 %v2093
      %2293 = vmatprep.subr.bf16.mxu0 0
      %2294 = vmatpush1.bf16.msra.mxu0 %v2092
      %2295 = vmatprep.subr.bf16.mxu0 0
      %2296 = vmatpush1.bf16.msra.mxu0 %v2091
      %2297 = vmatprep.subr.bf16.mxu0 0
      %2298 = vmatpush1.bf16.msra.mxu0 %v2090
      %2299 = vmatprep.subr.bf16.mxu0 0
      %2300 = vmatpush2.bf16.msra.mxu0 %v2105
      %2301 = vmatprep.subr.bf16.mxu0 0
      %2302 = vmatpush2.bf16.msra.mxu0 %v2104
      %2303 = vmatprep.subr.bf16.mxu0 0
      %2304 = vmatpush2.bf16.msra.mxu0 %v2103
      %2305 = vmatprep.subr.bf16.mxu0 0
      %2306 = vmatpush2.bf16.msra.mxu0 %v2102
      %2307 = vmatprep.subr.bf16.mxu0 0
      %2308 = vmatpush2.bf16.msra.mxu0 %v2101
      %2309 = vmatprep.subr.bf16.mxu0 0
      %2310 = vmatpush2.bf16.msra.mxu0 %v2100
      %2311 = vmatprep.subr.bf16.mxu0 0
      %2312 = vmatpush2.bf16.msra.mxu0 %v2099
      %2313 = vmatprep.subr.bf16.mxu0 0
      %2314 = vmatpush2.bf16.msra.mxu0 %v2098
      %2315 = vmatprep.mubr.bf16.mxu0 %v1717
      %2316 = vmatmul.mubr.bf16.gmra.mxu0 %v1716
      %v2317 = vpop.f32.mrf.mxu0
      %v2318 = vadd.f32 %v2253, %v2317
      %v2319 = vpop.f32.mrf.mxu0
      %v2320 = vpop.f32.mrf.mxu0
      %v2321 = vadd.f32 %v2256, %v2320
      %v2322 = vpop.f32.mrf.mxu0
      %2323 = vmatprep.mubr.bf16.mxu0 %v1726
      %2324 = vmatmul.mubr.bf16.gmra.mxu0 %v1725
      %v2325 = vpop.f32.mrf.mxu0
      %v2326 = vadd.f32 %v2261, %v2325
      %v2327 = vpop.f32.mrf.mxu0
      %v2328 = vpop.f32.mrf.mxu0
      %v2329 = vadd.f32 %v2264, %v2328
      %v2330 = vpop.f32.mrf.mxu0
      %2331 = vmatprep.mubr.bf16.mxu0 %v1735
      %2332 = vmatmul.mubr.bf16.gmra.mxu0 %v1734
      %v2333 = vpop.f32.mrf.mxu0
      %v2334 = vadd.f32 %v2269, %v2333
      %v2335 = vpop.f32.mrf.mxu0
      %v2336 = vpop.f32.mrf.mxu0
      %v2337 = vadd.f32 %v2272, %v2336
      %v2338 = vpop.f32.mrf.mxu0
      %2339 = vmatprep.mubr.bf16.mxu0 %v1744
      %2340 = vmatmul.mubr.bf16.gmra.mxu0 %v1743
      %v2341 = vpop.f32.mrf.mxu0
      %v2342 = vadd.f32 %v2277, %v2341
      %v2343 = vpop.f32.mrf.mxu0
      %v2344 = vpop.f32.mrf.mxu0
      %v2345 = vadd.f32 %v2280, %v2344
      %v2346 = vpop.f32.mrf.mxu0
      %2347 = vdwg.mxu0
      %2348 = vmatprep.subr.bf16.mxu0 0
      %2349 = vmatpush1.bf16.msra.mxu0 %v2113
      %2350 = vmatprep.subr.bf16.mxu0 0
      %2351 = vmatpush1.bf16.msra.mxu0 %v2112
      %2352 = vmatprep.subr.bf16.mxu0 0
      %2353 = vmatpush1.bf16.msra.mxu0 %v2111
      %2354 = vmatprep.subr.bf16.mxu0 0
      %2355 = vmatpush1.bf16.msra.mxu0 %v2110
      %2356 = vmatprep.subr.bf16.mxu0 0
      %2357 = vmatpush1.bf16.msra.mxu0 %v2109
      %2358 = vmatprep.subr.bf16.mxu0 0
      %2359 = vmatpush1.bf16.msra.mxu0 %v2108
      %2360 = vmatprep.subr.bf16.mxu0 0
      %2361 = vmatpush1.bf16.msra.mxu0 %v2107
      %2362 = vmatprep.subr.bf16.mxu0 0
      %2363 = vmatpush1.bf16.msra.mxu0 %v2106
      %2364 = vmatprep.subr.bf16.mxu0 0
      %2365 = vmatpush2.bf16.msra.mxu0 %v2121
      %2366 = vmatprep.subr.bf16.mxu0 0
      %2367 = vmatpush2.bf16.msra.mxu0 %v2120
      %2368 = vmatprep.subr.bf16.mxu0 0
      %2369 = vmatpush2.bf16.msra.mxu0 %v2119
      %2370 = vmatprep.subr.bf16.mxu0 0
      %2371 = vmatpush2.bf16.msra.mxu0 %v2118
      %2372 = vmatprep.subr.bf16.mxu0 0
      %2373 = vmatpush2.bf16.msra.mxu0 %v2117
      %2374 = vmatprep.subr.bf16.mxu0 0
      %2375 = vmatpush2.bf16.msra.mxu0 %v2116
      %2376 = vmatprep.subr.bf16.mxu0 0
      %2377 = vmatpush2.bf16.msra.mxu0 %v2115
      %2378 = vmatprep.subr.bf16.mxu0 0
      %2379 = vmatpush2.bf16.msra.mxu0 %v2114
      %2380 = vmatprep.mubr.bf16.mxu0 %v1719
      %2381 = vmatmul.mubr.bf16.gmra.mxu0 %v1718
      %v2382 = vpop.f32.mrf.mxu0
      %v2383 = vadd.f32 %v2318, %v2382
      %v2384 = vpop.f32.mrf.mxu0
      %v2385 = vpop.f32.mrf.mxu0
      %v2386 = vadd.f32 %v2321, %v2385
      %v2387 = vpop.f32.mrf.mxu0
      %2388 = vmatprep.mubr.bf16.mxu0 %v1728
      %2389 = vmatmul.mubr.bf16.gmra.mxu0 %v1727
      %v2390 = vpop.f32.mrf.mxu0
      %v2391 = vadd.f32 %v2326, %v2390
      %v2392 = vpop.f32.mrf.mxu0
      %v2393 = vpop.f32.mrf.mxu0
      %v2394 = vadd.f32 %v2329, %v2393
      %v2395 = vpop.f32.mrf.mxu0
      %2396 = vmatprep.mubr.bf16.mxu0 %v1737
      %2397 = vmatmul.mubr.bf16.gmra.mxu0 %v1736
      %v2398 = vpop.f32.mrf.mxu0
      %v2399 = vadd.f32 %v2334, %v2398
      %v2400 = vpop.f32.mrf.mxu0
      %v2401 = vpop.f32.mrf.mxu0
      %v2402 = vadd.f32 %v2337, %v2401
      %v2403 = vpop.f32.mrf.mxu0
      %2404 = vmatprep.mubr.bf16.mxu0 %v1746
      %2405 = vmatmul.mubr.bf16.gmra.mxu0 %v1745
      %v2406 = vpop.f32.mrf.mxu0
      %v2407 = vadd.f32 %v2342, %v2406
      %v2408 = vpop.f32.mrf.mxu0
      %v2409 = vpop.f32.mrf.mxu0
      %v2410 = vadd.f32 %v2345, %v2409
      %v2411 = vpop.f32.mrf.mxu0
      %2412 = vdwg.mxu0
      %2413 = vmatprep.subr.bf16.mxu0 0
      %2414 = vmatpush1.bf16.msra.mxu0 %v2129
      %2415 = vmatprep.subr.bf16.mxu0 0
      %2416 = vmatpush1.bf16.msra.mxu0 %v2128
      %2417 = vmatprep.subr.bf16.mxu0 0
      %2418 = vmatpush1.bf16.msra.mxu0 %v2127
      %2419 = vmatprep.subr.bf16.mxu0 0
      %2420 = vmatpush1.bf16.msra.mxu0 %v2126
      %2421 = vmatprep.subr.bf16.mxu0 0
      %2422 = vmatpush1.bf16.msra.mxu0 %v2125
      %2423 = vmatprep.subr.bf16.mxu0 0
      %2424 = vmatpush1.bf16.msra.mxu0 %v2124
      %2425 = vmatprep.subr.bf16.mxu0 0
      %2426 = vmatpush1.bf16.msra.mxu0 %v2123
      %2427 = vmatprep.subr.bf16.mxu0 0
      %2428 = vmatpush1.bf16.msra.mxu0 %v2122
      %2429 = vmatprep.subr.bf16.mxu0 0
      %2430 = vmatpush2.bf16.msra.mxu0 %v2137
      %2431 = vmatprep.subr.bf16.mxu0 0
      %2432 = vmatpush2.bf16.msra.mxu0 %v2136
      %2433 = vmatprep.subr.bf16.mxu0 0
      %2434 = vmatpush2.bf16.msra.mxu0 %v2135
      %2435 = vmatprep.subr.bf16.mxu0 0
      %2436 = vmatpush2.bf16.msra.mxu0 %v2134
      %2437 = vmatprep.subr.bf16.mxu0 0
      %2438 = vmatpush2.bf16.msra.mxu0 %v2133
      %2439 = vmatprep.subr.bf16.mxu0 0
      %2440 = vmatpush2.bf16.msra.mxu0 %v2132
      %2441 = vmatprep.subr.bf16.mxu0 0
      %2442 = vmatpush2.bf16.msra.mxu0 %v2131
      %2443 = vmatprep.subr.bf16.mxu0 0
      %2444 = vmatpush2.bf16.msra.mxu0 %v2130
      %2445 = vmatprep.mubr.bf16.mxu0 %v1721
      %2446 = vmatmul.mubr.bf16.gmra.mxu0 %v1720
      %v2447 = vpop.f32.mrf.mxu0
      %v2448 = vadd.f32 %v2383, %v2447
      %v2449 = vpop.f32.mrf.mxu0
      %v2450 = vpop.f32.mrf.mxu0
      %v2451 = vadd.f32 %v2386, %v2450
      %v2452 = vpop.f32.mrf.mxu0
      %2453 = vmatprep.mubr.bf16.mxu0 %v1730
      %2454 = vmatmul.mubr.bf16.gmra.mxu0 %v1729
      %v2455 = vpop.f32.mrf.mxu0
      %v2456 = vadd.f32 %v2391, %v2455
      %v2457 = vpop.f32.mrf.mxu0
      %v2458 = vpop.f32.mrf.mxu0
      %v2459 = vadd.f32 %v2394, %v2458
      %v2460 = vpop.f32.mrf.mxu0
      %2461 = vmatprep.mubr.bf16.mxu0 %v1739
      %2462 = vmatmul.mubr.bf16.gmra.mxu0 %v1738
      %v2463 = vpop.f32.mrf.mxu0
      %v2464 = vadd.f32 %v2399, %v2463
      %v2465 = vpop.f32.mrf.mxu0
      %v2466 = vpop.f32.mrf.mxu0
      %v2467 = vadd.f32 %v2402, %v2466
      %v2468 = vpop.f32.mrf.mxu0
      %2469 = vmatprep.mubr.bf16.mxu0 %v1748
      %2470 = vmatmul.mubr.bf16.gmra.mxu0 %v1747
      %v2471 = vpop.f32.mrf.mxu0
      %v2472 = vadd.f32 %v2407, %v2471
      %v2473 = vpop.f32.mrf.mxu0
      %v2474 = vpop.f32.mrf.mxu0
      %v2475 = vadd.f32 %v2410, %v2474
      %v2476 = vpop.f32.mrf.mxu0
      %2477 = vdwg.mxu0
      %2478 = vmatprep.subr.bf16.mxu0 0
      %2479 = vmatpush1.bf16.msra.mxu0 %v2145
      %2480 = vmatprep.subr.bf16.mxu0 0
      %2481 = vmatpush1.bf16.msra.mxu0 %v2144
      %2482 = vmatprep.subr.bf16.mxu0 0
      %2483 = vmatpush1.bf16.msra.mxu0 %v2143
      %2484 = vmatprep.subr.bf16.mxu0 0
      %2485 = vmatpush1.bf16.msra.mxu0 %v2142
      %2486 = vmatprep.subr.bf16.mxu0 0
      %2487 = vmatpush1.bf16.msra.mxu0 %v2141
      %2488 = vmatprep.subr.bf16.mxu0 0
      %2489 = vmatpush1.bf16.msra.mxu0 %v2140
      %2490 = vmatprep.subr.bf16.mxu0 0
      %2491 = vmatpush1.bf16.msra.mxu0 %v2139
      %2492 = vmatprep.subr.bf16.mxu0 0
      %2493 = vmatpush1.bf16.msra.mxu0 %v2138
      %2494 = vmatprep.subr.bf16.mxu0 0
      %2495 = vmatpush2.bf16.msra.mxu0 0
      %2496 = vmatprep.subr.bf16.mxu0 0
      %2497 = vmatpush2.bf16.msra.mxu0 0
      %2498 = vmatprep.subr.bf16.mxu0 0
      %2499 = vmatpush2.bf16.msra.mxu0 0
      %2500 = vmatprep.subr.bf16.mxu0 0
      %2501 = vmatpush2.bf16.msra.mxu0 0
      %2502 = vmatprep.subr.bf16.mxu0 0
      %2503 = vmatpush2.bf16.msra.mxu0 0
      %2504 = vmatprep.subr.bf16.mxu0 0
      %2505 = vmatpush2.bf16.msra.mxu0 0
      %2506 = vmatprep.subr.bf16.mxu0 0
      %2507 = vmatpush2.bf16.msra.mxu0 0
      %2508 = vmatprep.subr.bf16.mxu0 0
      %2509 = vmatpush2.bf16.msra.mxu0 0
      %2510 = vmatprep.mubr.bf16.mxu0 0
      %2511 = vmatmul.mubr.bf16.gmra.mxu0 %v1722
      %v2512 = vpop.f32.mrf.mxu0
      %v2513 = vadd.f32 %v2448, %v2512
      %v2514 = vpop.f32.mrf.mxu0
      %v2515 = vpop.f32.mrf.mxu0
      %v2516 = vadd.f32 %v2451, %v2515
      %v2517 = vpop.f32.mrf.mxu0
      %2518 = vmatprep.mubr.bf16.mxu0 0
      %2519 = vmatmul.mubr.bf16.gmra.mxu0 %v1731
      %v2520 = vpop.f32.mrf.mxu0
      %v2521 = vadd.f32 %v2456, %v2520
      %v2522 = vpop.f32.mrf.mxu0
      %v2523 = vpop.f32.mrf.mxu0
      %v2524 = vadd.f32 %v2459, %v2523
      %v2525 = vpop.f32.mrf.mxu0
      %2526 = vmatprep.mubr.bf16.mxu0 0
      %2527 = vmatmul.mubr.bf16.gmra.mxu0 %v1740
      %v2528 = vpop.f32.mrf.mxu0
      %v2529 = vadd.f32 %v2464, %v2528
      %v2530 = vpop.f32.mrf.mxu0
      %v2531 = vpop.f32.mrf.mxu0
      %v2532 = vadd.f32 %v2467, %v2531
      %v2533 = vpop.f32.mrf.mxu0
      %2534 = vmatprep.mubr.bf16.mxu0 0
      %2535 = vmatmul.mubr.bf16.gmra.mxu0 %v1749
      %v2536 = vpop.f32.mrf.mxu0
      %v2537 = vadd.f32 %v2472, %v2536
      %v2538 = vpop.f32.mrf.mxu0
      %v2539 = vpop.f32.mrf.mxu0
      %v2540 = vadd.f32 %v2475, %v2539
      %v2541 = vpop.f32.mrf.mxu0
      %2542 = vdwg.mxu0
      %v2543 = vadd.f32 %v1410, %v2513
      %v2544 = vadd.f32 %v1411, %v2516
      %v2545 = vadd.f32 %v1412, %v2521
      %v2546 = vadd.f32 %v1413, %v2524
      %v2547 = vadd.f32 %v1414, %v2529
      %v2548 = vadd.f32 %v1415, %v2532
      %v2549 = vadd.f32 %v1416, %v2537
      %v2550 = vadd.f32 %v1417, %v2540
      %v2551 = vmax.f32 %v2543, 0.0
      %v2552 = vmax.f32 %v2544, 0.0
      %v2553 = vmax.f32 %v2545, 0.0
      %v2554 = vmax.f32 %v2546, 0.0
      %v2555 = vmax.f32 %v2547, 0.0
      %v2556 = vmax.f32 %v2548, 0.0
      %v2557 = vmax.f32 %v2549, 0.0
      %v2558 = vmax.f32 %v2550, 0.0
      %2559 = vst [vmem:[%s224] sm:$0xff] %v2551
      %2560 = vst [vmem:[%s224 + $0x8] sm:$0xff] %v2552
      %2561 = vst [vmem:[%s224 + $0x10] sm:$0xff] %v2553
      %2562 = vst [vmem:[%s224 + $0x18] sm:$0xff] %v2554
      %2563 = vst [vmem:[%s224 + $0x20] sm:$0xff] %v2555
      %2564 = vst [vmem:[%s224 + $0x28] sm:$0xff] %v2556
      %2565 = vst [vmem:[%s224 + $0x30] sm:$0xff] %v2557
      %2566 = vst [vmem:[%s224 + $0x38] sm:$0xff] %v2558
      %p2567 = scmp.lt.s32.totalorder %s16, 1
      %s2568 = scalar_select %p2567, %s16, 1
      %s2569 = smul.addr %s2568, 8
      %s2570 = smul.addr %s2569, 8
      %s2571 = scalar_lea.vmem %s5, %s2570
      // Predicated region
      $region41: #{basic_block_forward.1} parent=39 // pred_check
        %p2572 = pneg %p144
      $region42: #{basic_block_forward.1} parent=39 // pred_check_branch
        %2574 = sbr.rel (%p2572) target = $region44
      $region43: #{basic_block_forward.1} parent=39 // pred_region
        _
      $region44: #{basic_block_forward.1} parent=39 // pred_fallthru
        _
    $region40: #{basic_block_forward.1} parent=5 // pred_fallthru
      _
    %p2575 = scmp.le.s32.totalorder 2, %s11
    // Predicated region
    $region45: #{basic_block_forward.1} parent=5 // pred_check
      %p2576 = pneg %p2575
    $region46: #{basic_block_forward.1} parent=5 // pred_check_branch
      %2578 = sbr.rel (%p2576) target = $region48
    $region47: #{basic_block_forward.1} parent=5 // pred_region
      %s2579 = ssub.s32 %s11, 2
      // Predicated region
      $region49: #{basic_block_forward.1} parent=47 // pred_check
        %p2580 = pneg %p150
      $region50: #{basic_block_forward.1} parent=47 // pred_check_branch
        %2582 = sbr.rel (%p2580) target = $region52
      $region51: #{basic_block_forward.1} parent=47 // pred_region
        %p2583 = scmp.lt.s32.totalorder %s17, 1
        %s2584 = scalar_select %p2583, %s17, 1
        %s2585 = smul.addr %s2584, 8
        %s2586 = smul.addr %s2585, 8
        %s2587 = scalar_lea.vmem %s5, %s2586
      $region52: #{basic_block_forward.1} parent=47 // pred_fallthru
        _
    $region48: #{basic_block_forward.1} parent=5 // pred_fallthru
      _
  $region6: #{basic_block_forward.1} parent=0 // loop_footer
    %s15 = sadd.s32 1, %s11
  $region7: #{basic_block_forward.1} parent=0 // loop_footer_branch
    %10 = sbr.rel target = $region3
  $region8: #{basic_block_forward.1} parent=0 // loop_exit
    _

</llo_original>
